<compile_context>
chip_gen: v7x
topology: tpu7x:2x2x1
jax: 0.10.0
libtpu: 0.0.40
codegen_flags: <defaults>
</compile_context>

<pallas_src>
import jax
import jax.numpy as jnp
from jax.experimental import pallas as pl
from jax.experimental.pallas import tpu as pltpu

# ---- model hyper-parameters (small, consistent with the module defaults) ----
DIM = 32          # dim
HEADS = 2         # heads
DIM_HEAD = 16     # dim_head (scaled down from 64 for a small test)
FF_MULT = 4       # ff_mult
SEQ = 8           # sequence length
BATCH = 2
POOL_K = 2        # pool_kernel == stride == 2, padding == 0
QK_NORM_SCALE = 10.0  # x-transformers/zeta softmax scale used when qk_norm=True


def _echo_block_kernel(x_ref, wq_ref, wk_ref, wv_ref, wo_ref,
                       qscale_ref, kscale_ref,
                       w1_ref, b1_ref, w2p_ref, b2p_ref,
                       pmat_ref, mask_ref, out_ref):
    x = x_ref[...]                                   # (M, D) f32, M = B*N
    mask_bias = mask_ref[...]                        # (M, M) block-diagonal causal bias
    m_rows, _ = x.shape

    # ---- causal multi-head attention with qk_norm (heads statically unrolled) ----
    attn = jnp.zeros((m_rows, DIM), dtype=jnp.float32)
    for h in range(HEADS):                           # H=2, static unroll
        qh = jnp.dot(x, wq_ref[h], preferred_element_type=jnp.float32)   # (M, DH)
        kh = jnp.dot(x, wk_ref[h], preferred_element_type=jnp.float32)
        vh = jnp.dot(x, wv_ref[h], preferred_element_type=jnp.float32)

        # qk_norm: L2-normalize along the head dim, learned per-head scale.
        qh = qh * jax.lax.rsqrt(jnp.sum(qh * qh, axis=-1, keepdims=True) + 1e-12)
        kh = kh * jax.lax.rsqrt(jnp.sum(kh * kh, axis=-1, keepdims=True) + 1e-12)
        qh = qh * qscale_ref[h:h + 1, :]
        kh = kh * kscale_ref[h:h + 1, :]

        # all batches at once; cross-batch / non-causal entries killed by mask_bias
        logits = jnp.dot(qh, kh.T, preferred_element_type=jnp.float32) * QK_NORM_SCALE
        logits = logits + mask_bias

        # numerically stable softmax; reciprocal on the EUP
        logits = logits - jnp.max(logits, axis=-1, keepdims=True)
        p = jnp.exp(logits)
        p = p * pl.reciprocal(jnp.sum(p, axis=-1, keepdims=True), approx=True)

        oh = jnp.dot(p, vh, preferred_element_type=jnp.float32)          # (M, DH)
        # fold the per-head output projection directly into the running sum
        attn = attn + jnp.dot(oh, wo_ref[h], preferred_element_type=jnp.float32)

    # ---- FeedForward(dim, dim, ff_mult) + residual, fused with AvgPool1d ----
    hdn = jnp.dot(attn, w1_ref[...], preferred_element_type=jnp.float32) + b1_ref[...]
    # TODO(synk): nn.GELU() default is the exact erf form; tanh approximation used here.
    hdn = jax.nn.gelu(hdn, approximate=True)

    # pooled = (hdn @ W2 + b2 + attn) @ P, with W2@P / b2@P pre-folded in the wrapper.
    pooled = (jnp.dot(attn, pmat_ref[...], preferred_element_type=jnp.float32)
              + jnp.dot(hdn, w2p_ref[...], preferred_element_type=jnp.float32)
              + b2p_ref[...])

    out_ref[...] = pooled.astype(out_ref.dtype)      # single store for the whole batch


@jax.jit
def echo_block(x, params):
    wq, wk, wv, wo, qs, ks, w1, b1, w2, b2 = params
    B, N, D = x.shape
    FF = D * FF_MULT
    Dp = D // POOL_K
    M = B * N

    # ---- wrapper-side (un-timed) layout prep / constant folding ----
    x2 = x.reshape(M, D)
    wq_h = wq.reshape(D, HEADS, DIM_HEAD).transpose(1, 0, 2)   # (H, D, DH)
    wk_h = wk.reshape(D, HEADS, DIM_HEAD).transpose(1, 0, 2)
    wv_h = wv.reshape(D, HEADS, DIM_HEAD).transpose(1, 0, 2)
    wo_h = wo.reshape(HEADS, DIM_HEAD, D)                      # (H, DH, D)

    # pooling matrix P (D, Dp): P[i, j] = 1/K if i // K == j else 0
    r = jnp.arange(D)
    c = jnp.arange(Dp)
    pmat = ((r[:, None] // POOL_K) == c[None, :]).astype(jnp.float32) / POOL_K
    w2p = w2 @ pmat                                            # (FF, Dp)
    b2p = b2 @ pmat                                            # (1, Dp)

    # block-diagonal causal additive mask over the flattened (B*N) axis
    idx = jnp.arange(M)
    bi, pi = idx // N, idx % N
    mask_bias = jnp.where((bi[:, None] == bi[None, :]) & (pi[None, :] <= pi[:, None]),
                          0.0, -1e30).astype(jnp.float32)

    def full(shape):
        return pl.BlockSpec(shape, lambda i, s=shape: (0,) * len(s))

    in_specs = [
        full((M, D)),                                # x (flattened)
        full((HEADS, D, DIM_HEAD)),                  # Wq per head
        full((HEADS, D, DIM_HEAD)),                  # Wk per head
        full((HEADS, D, DIM_HEAD)),                  # Wv per head
        full((HEADS, DIM_HEAD, D)),                  # Wo per head
        full((HEADS, DIM_HEAD)),                     # q scale
        full((HEADS, DIM_HEAD)),                     # k scale
        full((D, FF)),                               # W1
        full((1, FF)),                               # b1
        full((FF, Dp)),                              # W2 @ P
        full((1, Dp)),                               # b2 @ P
        full((D, Dp)),                               # P (for attn residual pooling)
        full((M, M)),                                # causal block-diagonal mask
    ]
    out_specs = full((M, Dp))

    out2 = pl.pallas_call(
        _echo_block_kernel,
        out_shape=jax.ShapeDtypeStruct((M, Dp), x.dtype),
        grid=(1,),                                   # single invocation (no per-batch grid)
        in_specs=in_specs,
        out_specs=out_specs,
        compiler_params=pltpu.CompilerParams(
            dimension_semantics=("arbitrary",)),
    )(x2, wq_h, wk_h, wv_h, wo_h, qs, ks, w1, b1, w2p, b2p, pmat, mask_bias)

    return out2.reshape(B, N, Dp)


if __name__ == "__main__":
    key = jax.random.PRNGKey(0)
    keys = jax.random.split(key, 8)

    HD = HEADS * DIM_HEAD
    FF = DIM * FF_MULT

    def lin_init(k, shape, fan_in):
        bound = 1.0 / (fan_in ** 0.5)
        return jax.random.uniform(k, shape, jnp.float32, -bound, bound)

    x = jax.random.normal(keys[0], (BATCH, SEQ, DIM), jnp.float32)

    wq = lin_init(keys[1], (DIM, HD), DIM)
    wk = lin_init(keys[2], (DIM, HD), DIM)
    wv = lin_init(keys[3], (DIM, HD), DIM)
    wo = lin_init(keys[4], (HD, DIM), HD)
    qs = jnp.ones((HEADS, DIM_HEAD), jnp.float32)   # qk_norm learned scales (init 1)
    ks = jnp.ones((HEADS, DIM_HEAD), jnp.float32)
    w1 = lin_init(keys[5], (DIM, FF), DIM)
    b1 = jnp.zeros((1, FF), jnp.float32)
    w2 = lin_init(keys[6], (FF, DIM), FF)
    b2 = jnp.zeros((1, DIM), jnp.float32)

    params = (wq, wk, wv, wo, qs, ks, w1, b1, w2, b2)

    out = echo_block(x, params)
    jax.block_until_ready(out)
    assert out.shape == (BATCH, SEQ, DIM // POOL_K), out.shape
    print("KERNEL_OK")
</pallas_src>

<mosaic_0001>
module attributes {stable_mosaic.version = 11 : i64} {
  func.func @_echo_block_kernel(%arg0: i32, %arg1: memref<16x32xf32, #tpu.memory_space<vmem>>, %arg2: memref<2x32x16xf32, #tpu.memory_space<vmem>>, %arg3: memref<2x32x16xf32, #tpu.memory_space<vmem>>, %arg4: memref<2x32x16xf32, #tpu.memory_space<vmem>>, %arg5: memref<2x16x32xf32, #tpu.memory_space<vmem>>, %arg6: memref<2x16xf32, #tpu.memory_space<vmem>>, %arg7: memref<2x16xf32, #tpu.memory_space<vmem>>, %arg8: memref<32x128xf32, #tpu.memory_space<vmem>>, %arg9: memref<1x128xf32, #tpu.memory_space<vmem>>, %arg10: memref<128x16xf32, #tpu.memory_space<vmem>>, %arg11: memref<1x16xf32, #tpu.memory_space<vmem>>, %arg12: memref<32x16xf32, #tpu.memory_space<vmem>>, %arg13: memref<16x16xf32, #tpu.memory_space<vmem>>, %arg14: memref<16x16xf32, #tpu.memory_space<vmem>>) attributes {dimension_semantics = [#tpu.dimension_semantics<arbitrary>], iteration_bounds = array<i64: 1>, scalar_prefetch = 0 : i64, scratch_operands = 0 : i64, tpu.core_type = #tpu.core_type<tc>, window_params = [{pipeline_mode = #tpu.pipeline_mode<synchronous>, transform_indices = @transform_0, window_bounds = array<i64: 16, 32>}, {pipeline_mode = #tpu.pipeline_mode<synchronous>, transform_indices = @transform_1, window_bounds = array<i64: 2, 32, 16>}, {pipeline_mode = #tpu.pipeline_mode<synchronous>, transform_indices = @transform_2, window_bounds = array<i64: 2, 32, 16>}, {pipeline_mode = #tpu.pipeline_mode<synchronous>, transform_indices = @transform_3, window_bounds = array<i64: 2, 32, 16>}, {pipeline_mode = #tpu.pipeline_mode<synchronous>, transform_indices = @transform_4, window_bounds = array<i64: 2, 16, 32>}, {pipeline_mode = #tpu.pipeline_mode<synchronous>, transform_indices = @transform_5, window_bounds = array<i64: 2, 16>}, {pipeline_mode = #tpu.pipeline_mode<synchronous>, transform_indices = @transform_6, window_bounds = array<i64: 2, 16>}, {pipeline_mode = #tpu.pipeline_mode<synchronous>, transform_indices = @transform_7, window_bounds = array<i64: 32, 128>}, {pipeline_mode = #tpu.pipeline_mode<synchronous>, transform_indices = @transform_8, window_bounds = array<i64: 1, 128>}, {pipeline_mode = #tpu.pipeline_mode<synchronous>, transform_indices = @transform_9, window_bounds = array<i64: 128, 16>}, {pipeline_mode = #tpu.pipeline_mode<synchronous>, transform_indices = @transform_10, window_bounds = array<i64: 1, 16>}, {pipeline_mode = #tpu.pipeline_mode<synchronous>, transform_indices = @transform_11, window_bounds = array<i64: 32, 16>}, {pipeline_mode = #tpu.pipeline_mode<synchronous>, transform_indices = @transform_12, window_bounds = array<i64: 16, 16>}, {pipeline_mode = #tpu.pipeline_mode<synchronous>, transform_indices = @transform_13, window_bounds = array<i64: 16, 16>}]} {
    %c0 = arith.constant 0 : index
    %c0_0 = arith.constant 0 : index
    %0 = vector.load %arg1[%c0, %c0_0] : memref<16x32xf32, #tpu.memory_space<vmem>>, vector<16x32xf32>
    %c0_1 = arith.constant 0 : index
    %c0_2 = arith.constant 0 : index
    %1 = vector.load %arg13[%c0_1, %c0_2] : memref<16x16xf32, #tpu.memory_space<vmem>>, vector<16x16xf32>
    %cst = arith.constant 0.000000e+00 : f32
    %2 = vector.broadcast %cst : f32 to vector<16x32xf32>
    %c0_3 = arith.constant 0 : index
    %c0_4 = arith.constant 0 : index
    %c0_5 = arith.constant 0 : index
    %3 = vector.load %arg2[%c0_3, %c0_4, %c0_5] : memref<2x32x16xf32, #tpu.memory_space<vmem>>, vector<1x32x16xf32>
    %4 = vector.shape_cast %3 : vector<1x32x16xf32> to vector<32x16xf32>
    %cst_6 = arith.constant dense<0.000000e+00> : vector<16x16xf32>
    %5 = tpu.matmul %0, %4, %cst_6 {dimension_numbers = #tpu.dot_dimension_numbers<[1], [0], [0], [1], [0, 0, 1, 1], [], []>} : vector<16x32xf32>, vector<32x16xf32>, vector<16x16xf32> -> vector<16x16xf32>
    %c0_7 = arith.constant 0 : index
    %c0_8 = arith.constant 0 : index
    %c0_9 = arith.constant 0 : index
    %6 = vector.load %arg3[%c0_7, %c0_8, %c0_9] : memref<2x32x16xf32, #tpu.memory_space<vmem>>, vector<1x32x16xf32>
    %7 = vector.shape_cast %6 : vector<1x32x16xf32> to vector<32x16xf32>
    %cst_10 = arith.constant dense<0.000000e+00> : vector<16x16xf32>
    %8 = tpu.matmul %0, %7, %cst_10 {dimension_numbers = #tpu.dot_dimension_numbers<[1], [0], [0], [1], [0, 0, 1, 1], [], []>} : vector<16x32xf32>, vector<32x16xf32>, vector<16x16xf32> -> vector<16x16xf32>
    %c0_11 = arith.constant 0 : index
    %c0_12 = arith.constant 0 : index
    %c0_13 = arith.constant 0 : index
    %9 = vector.load %arg4[%c0_11, %c0_12, %c0_13] : memref<2x32x16xf32, #tpu.memory_space<vmem>>, vector<1x32x16xf32>
    %10 = vector.shape_cast %9 : vector<1x32x16xf32> to vector<32x16xf32>
    %cst_14 = arith.constant dense<0.000000e+00> : vector<16x16xf32>
    %11 = tpu.matmul %0, %10, %cst_14 {dimension_numbers = #tpu.dot_dimension_numbers<[1], [0], [0], [1], [0, 0, 1, 1], [], []>} : vector<16x32xf32>, vector<32x16xf32>, vector<16x16xf32> -> vector<16x16xf32>
    %12 = arith.mulf %5, %5 : vector<16x16xf32>
    %cst_15 = arith.constant dense<0.000000e+00> : vector<16xf32>
    %13 = vector.multi_reduction <add>, %12, %cst_15 [1] : vector<16x16xf32> to vector<16xf32>
    %14 = vector.shape_cast %13 : vector<16xf32> to vector<16x1xf32>
    %cst_16 = arith.constant 9.99999996E-13 : f32
    %15 = vector.broadcast %cst_16 : f32 to vector<16x1xf32>
    %16 = arith.addf %14, %15 : vector<16x1xf32>
    %17 = math.rsqrt %16 : vector<16x1xf32>
    %18 = vector.broadcast %17 : vector<16x1xf32> to vector<16x16xf32>
    %19 = arith.mulf %5, %18 : vector<16x16xf32>
    %20 = arith.mulf %8, %8 : vector<16x16xf32>
    %cst_17 = arith.constant dense<0.000000e+00> : vector<16xf32>
    %21 = vector.multi_reduction <add>, %20, %cst_17 [1] : vector<16x16xf32> to vector<16xf32>
    %22 = vector.shape_cast %21 : vector<16xf32> to vector<16x1xf32>
    %cst_18 = arith.constant 9.99999996E-13 : f32
    %23 = vector.broadcast %cst_18 : f32 to vector<16x1xf32>
    %24 = arith.addf %22, %23 : vector<16x1xf32>
    %25 = math.rsqrt %24 : vector<16x1xf32>
    %26 = vector.broadcast %25 : vector<16x1xf32> to vector<16x16xf32>
    %27 = arith.mulf %8, %26 : vector<16x16xf32>
    %c0_19 = arith.constant 0 : index
    %c0_20 = arith.constant 0 : index
    %28 = vector.load %arg6[%c0_19, %c0_20] : memref<2x16xf32, #tpu.memory_space<vmem>>, vector<1x16xf32>
    %29 = vector.broadcast %28 : vector<1x16xf32> to vector<16x16xf32>
    %30 = arith.mulf %19, %29 : vector<16x16xf32>
    %c0_21 = arith.constant 0 : index
    %c0_22 = arith.constant 0 : index
    %31 = vector.load %arg7[%c0_21, %c0_22] : memref<2x16xf32, #tpu.memory_space<vmem>>, vector<1x16xf32>
    %32 = vector.broadcast %31 : vector<1x16xf32> to vector<16x16xf32>
    %33 = arith.mulf %27, %32 : vector<16x16xf32>
    %34 = tpu.transpose %33, [1, 0] : vector<16x16xf32> -> vector<16x16xf32>
    %cst_23 = arith.constant dense<0.000000e+00> : vector<16x16xf32>
    %35 = tpu.matmul %30, %34, %cst_23 {dimension_numbers = #tpu.dot_dimension_numbers<[1], [0], [0], [1], [0, 0, 1, 1], [], []>} : vector<16x16xf32>, vector<16x16xf32>, vector<16x16xf32> -> vector<16x16xf32>
    %cst_24 = arith.constant 1.000000e+01 : f32
    %36 = vector.broadcast %cst_24 : f32 to vector<16x16xf32>
    %37 = arith.mulf %35, %36 : vector<16x16xf32>
    %38 = arith.addf %37, %1 : vector<16x16xf32>
    %cst_25 = arith.constant dense<0xFF800000> : vector<16xf32>
    %39 = vector.multi_reduction <maximumf>, %38, %cst_25 [1] : vector<16x16xf32> to vector<16xf32>
    %40 = vector.shape_cast %39 : vector<16xf32> to vector<16x1xf32>
    %41 = vector.broadcast %40 : vector<16x1xf32> to vector<16x16xf32>
    %42 = arith.subf %38, %41 : vector<16x16xf32>
    %43 = math.exp %42 : vector<16x16xf32>
    %cst_26 = arith.constant dense<0.000000e+00> : vector<16xf32>
    %44 = vector.multi_reduction <add>, %43, %cst_26 [1] : vector<16x16xf32> to vector<16xf32>
    %45 = vector.shape_cast %44 : vector<16xf32> to vector<16x1xf32>
    %46 = tpu.reciprocal %45 {approx = true} : vector<16x1xf32> -> vector<16x1xf32>
    %47 = vector.broadcast %46 : vector<16x1xf32> to vector<16x16xf32>
    %48 = arith.mulf %43, %47 : vector<16x16xf32>
    %cst_27 = arith.constant dense<0.000000e+00> : vector<16x16xf32>
    %49 = tpu.matmul %48, %11, %cst_27 {dimension_numbers = #tpu.dot_dimension_numbers<[1], [0], [0], [1], [0, 0, 1, 1], [], []>} : vector<16x16xf32>, vector<16x16xf32>, vector<16x16xf32> -> vector<16x16xf32>
    %c0_28 = arith.constant 0 : index
    %c0_29 = arith.constant 0 : index
    %c0_30 = arith.constant 0 : index
    %50 = vector.load %arg5[%c0_28, %c0_29, %c0_30] : memref<2x16x32xf32, #tpu.memory_space<vmem>>, vector<1x16x32xf32>
    %51 = vector.shape_cast %50 : vector<1x16x32xf32> to vector<16x32xf32>
    %cst_31 = arith.constant dense<0.000000e+00> : vector<16x32xf32>
    %52 = tpu.matmul %49, %51, %cst_31 {dimension_numbers = #tpu.dot_dimension_numbers<[1], [0], [0], [1], [0, 0, 1, 1], [], []>} : vector<16x16xf32>, vector<16x32xf32>, vector<16x32xf32> -> vector<16x32xf32>
    %53 = arith.addf %2, %52 : vector<16x32xf32>
    %c1 = arith.constant 1 : index
    %c0_32 = arith.constant 0 : index
    %c0_33 = arith.constant 0 : index
    %54 = vector.load %arg2[%c1, %c0_32, %c0_33] : memref<2x32x16xf32, #tpu.memory_space<vmem>>, vector<1x32x16xf32>
    %55 = vector.shape_cast %54 : vector<1x32x16xf32> to vector<32x16xf32>
    %cst_34 = arith.constant dense<0.000000e+00> : vector<16x16xf32>
    %56 = tpu.matmul %0, %55, %cst_34 {dimension_numbers = #tpu.dot_dimension_numbers<[1], [0], [0], [1], [0, 0, 1, 1], [], []>} : vector<16x32xf32>, vector<32x16xf32>, vector<16x16xf32> -> vector<16x16xf32>
    %c1_35 = arith.constant 1 : index
    %c0_36 = arith.constant 0 : index
    %c0_37 = arith.constant 0 : index
    %57 = vector.load %arg3[%c1_35, %c0_36, %c0_37] : memref<2x32x16xf32, #tpu.memory_space<vmem>>, vector<1x32x16xf32>
    %58 = vector.shape_cast %57 : vector<1x32x16xf32> to vector<32x16xf32>
    %cst_38 = arith.constant dense<0.000000e+00> : vector<16x16xf32>
    %59 = tpu.matmul %0, %58, %cst_38 {dimension_numbers = #tpu.dot_dimension_numbers<[1], [0], [0], [1], [0, 0, 1, 1], [], []>} : vector<16x32xf32>, vector<32x16xf32>, vector<16x16xf32> -> vector<16x16xf32>
    %c1_39 = arith.constant 1 : index
    %c0_40 = arith.constant 0 : index
    %c0_41 = arith.constant 0 : index
    %60 = vector.load %arg4[%c1_39, %c0_40, %c0_41] : memref<2x32x16xf32, #tpu.memory_space<vmem>>, vector<1x32x16xf32>
    %61 = vector.shape_cast %60 : vector<1x32x16xf32> to vector<32x16xf32>
    %cst_42 = arith.constant dense<0.000000e+00> : vector<16x16xf32>
    %62 = tpu.matmul %0, %61, %cst_42 {dimension_numbers = #tpu.dot_dimension_numbers<[1], [0], [0], [1], [0, 0, 1, 1], [], []>} : vector<16x32xf32>, vector<32x16xf32>, vector<16x16xf32> -> vector<16x16xf32>
    %63 = arith.mulf %56, %56 : vector<16x16xf32>
    %cst_43 = arith.constant dense<0.000000e+00> : vector<16xf32>
    %64 = vector.multi_reduction <add>, %63, %cst_43 [1] : vector<16x16xf32> to vector<16xf32>
    %65 = vector.shape_cast %64 : vector<16xf32> to vector<16x1xf32>
    %cst_44 = arith.constant 9.99999996E-13 : f32
    %66 = vector.broadcast %cst_44 : f32 to vector<16x1xf32>
    %67 = arith.addf %65, %66 : vector<16x1xf32>
    %68 = math.rsqrt %67 : vector<16x1xf32>
    %69 = vector.broadcast %68 : vector<16x1xf32> to vector<16x16xf32>
    %70 = arith.mulf %56, %69 : vector<16x16xf32>
    %71 = arith.mulf %59, %59 : vector<16x16xf32>
    %cst_45 = arith.constant dense<0.000000e+00> : vector<16xf32>
    %72 = vector.multi_reduction <add>, %71, %cst_45 [1] : vector<16x16xf32> to vector<16xf32>
    %73 = vector.shape_cast %72 : vector<16xf32> to vector<16x1xf32>
    %cst_46 = arith.constant 9.99999996E-13 : f32
    %74 = vector.broadcast %cst_46 : f32 to vector<16x1xf32>
    %75 = arith.addf %73, %74 : vector<16x1xf32>
    %76 = math.rsqrt %75 : vector<16x1xf32>
    %77 = vector.broadcast %76 : vector<16x1xf32> to vector<16x16xf32>
    %78 = arith.mulf %59, %77 : vector<16x16xf32>
    %c1_47 = arith.constant 1 : index
    %c0_48 = arith.constant 0 : index
    %79 = vector.load %arg6[%c1_47, %c0_48] : memref<2x16xf32, #tpu.memory_space<vmem>>, vector<1x16xf32>
    %80 = vector.broadcast %79 : vector<1x16xf32> to vector<16x16xf32>
    %81 = arith.mulf %70, %80 : vector<16x16xf32>
    %c1_49 = arith.constant 1 : index
    %c0_50 = arith.constant 0 : index
    %82 = vector.load %arg7[%c1_49, %c0_50] : memref<2x16xf32, #tpu.memory_space<vmem>>, vector<1x16xf32>
    %83 = vector.broadcast %82 : vector<1x16xf32> to vector<16x16xf32>
    %84 = arith.mulf %78, %83 : vector<16x16xf32>
    %85 = tpu.transpose %84, [1, 0] : vector<16x16xf32> -> vector<16x16xf32>
    %cst_51 = arith.constant dense<0.000000e+00> : vector<16x16xf32>
    %86 = tpu.matmul %81, %85, %cst_51 {dimension_numbers = #tpu.dot_dimension_numbers<[1], [0], [0], [1], [0, 0, 1, 1], [], []>} : vector<16x16xf32>, vector<16x16xf32>, vector<16x16xf32> -> vector<16x16xf32>
    %cst_52 = arith.constant 1.000000e+01 : f32
    %87 = vector.broadcast %cst_52 : f32 to vector<16x16xf32>
    %88 = arith.mulf %86, %87 : vector<16x16xf32>
    %89 = arith.addf %88, %1 : vector<16x16xf32>
    %cst_53 = arith.constant dense<0xFF800000> : vector<16xf32>
    %90 = vector.multi_reduction <maximumf>, %89, %cst_53 [1] : vector<16x16xf32> to vector<16xf32>
    %91 = vector.shape_cast %90 : vector<16xf32> to vector<16x1xf32>
    %92 = vector.broadcast %91 : vector<16x1xf32> to vector<16x16xf32>
    %93 = arith.subf %89, %92 : vector<16x16xf32>
    %94 = math.exp %93 : vector<16x16xf32>
    %cst_54 = arith.constant dense<0.000000e+00> : vector<16xf32>
    %95 = vector.multi_reduction <add>, %94, %cst_54 [1] : vector<16x16xf32> to vector<16xf32>
    %96 = vector.shape_cast %95 : vector<16xf32> to vector<16x1xf32>
    %97 = tpu.reciprocal %96 {approx = true} : vector<16x1xf32> -> vector<16x1xf32>
    %98 = vector.broadcast %97 : vector<16x1xf32> to vector<16x16xf32>
    %99 = arith.mulf %94, %98 : vector<16x16xf32>
    %cst_55 = arith.constant dense<0.000000e+00> : vector<16x16xf32>
    %100 = tpu.matmul %99, %62, %cst_55 {dimension_numbers = #tpu.dot_dimension_numbers<[1], [0], [0], [1], [0, 0, 1, 1], [], []>} : vector<16x16xf32>, vector<16x16xf32>, vector<16x16xf32> -> vector<16x16xf32>
    %c1_56 = arith.constant 1 : index
    %c0_57 = arith.constant 0 : index
    %c0_58 = arith.constant 0 : index
    %101 = vector.load %arg5[%c1_56, %c0_57, %c0_58] : memref<2x16x32xf32, #tpu.memory_space<vmem>>, vector<1x16x32xf32>
    %102 = vector.shape_cast %101 : vector<1x16x32xf32> to vector<16x32xf32>
    %cst_59 = arith.constant dense<0.000000e+00> : vector<16x32xf32>
    %103 = tpu.matmul %100, %102, %cst_59 {dimension_numbers = #tpu.dot_dimension_numbers<[1], [0], [0], [1], [0, 0, 1, 1], [], []>} : vector<16x16xf32>, vector<16x32xf32>, vector<16x32xf32> -> vector<16x32xf32>
    %104 = arith.addf %53, %103 : vector<16x32xf32>
    %c0_60 = arith.constant 0 : index
    %c0_61 = arith.constant 0 : index
    %105 = vector.load %arg8[%c0_60, %c0_61] : memref<32x128xf32, #tpu.memory_space<vmem>>, vector<32x128xf32>
    %cst_62 = arith.constant dense<0.000000e+00> : vector<16x128xf32>
    %106 = tpu.matmul %104, %105, %cst_62 {dimension_numbers = #tpu.dot_dimension_numbers<[1], [0], [0], [1], [0, 0, 1, 1], [], []>} : vector<16x32xf32>, vector<32x128xf32>, vector<16x128xf32> -> vector<16x128xf32>
    %c0_63 = arith.constant 0 : index
    %c0_64 = arith.constant 0 : index
    %107 = vector.load %arg9[%c0_63, %c0_64] : memref<1x128xf32, #tpu.memory_space<vmem>>, vector<1x128xf32>
    %108 = vector.broadcast %107 : vector<1x128xf32> to vector<16x128xf32>
    %109 = arith.addf %106, %108 : vector<16x128xf32>
    %110 = arith.mulf %109, %109 : vector<16x128xf32>
    %111 = arith.mulf %109, %110 : vector<16x128xf32>
    %cst_65 = arith.constant 4.471500e-02 : f32
    %112 = vector.broadcast %cst_65 : f32 to vector<16x128xf32>
    %113 = arith.mulf %112, %111 : vector<16x128xf32>
    %114 = arith.addf %109, %113 : vector<16x128xf32>
    %cst_66 = arith.constant 0.797884583 : f32
    %115 = vector.broadcast %cst_66 : f32 to vector<16x128xf32>
    %116 = arith.mulf %115, %114 : vector<16x128xf32>
    %117 = math.tanh %116 : vector<16x128xf32>
    %cst_67 = arith.constant 1.000000e+00 : f32
    %118 = vector.broadcast %cst_67 : f32 to vector<16x128xf32>
    %119 = arith.addf %118, %117 : vector<16x128xf32>
    %cst_68 = arith.constant 5.000000e-01 : f32
    %120 = vector.broadcast %cst_68 : f32 to vector<16x128xf32>
    %121 = arith.mulf %120, %119 : vector<16x128xf32>
    %122 = arith.mulf %109, %121 : vector<16x128xf32>
    %c0_69 = arith.constant 0 : index
    %c0_70 = arith.constant 0 : index
    %123 = vector.load %arg12[%c0_69, %c0_70] : memref<32x16xf32, #tpu.memory_space<vmem>>, vector<32x16xf32>
    %cst_71 = arith.constant dense<0.000000e+00> : vector<16x16xf32>
    %124 = tpu.matmul %104, %123, %cst_71 {dimension_numbers = #tpu.dot_dimension_numbers<[1], [0], [0], [1], [0, 0, 1, 1], [], []>} : vector<16x32xf32>, vector<32x16xf32>, vector<16x16xf32> -> vector<16x16xf32>
    %c0_72 = arith.constant 0 : index
    %c0_73 = arith.constant 0 : index
    %125 = vector.load %arg10[%c0_72, %c0_73] : memref<128x16xf32, #tpu.memory_space<vmem>>, vector<128x16xf32>
    %cst_74 = arith.constant dense<0.000000e+00> : vector<16x16xf32>
    %126 = tpu.matmul %122, %125, %cst_74 {dimension_numbers = #tpu.dot_dimension_numbers<[1], [0], [0], [1], [0, 0, 1, 1], [], []>} : vector<16x128xf32>, vector<128x16xf32>, vector<16x16xf32> -> vector<16x16xf32>
    %127 = arith.addf %124, %126 : vector<16x16xf32>
    %c0_75 = arith.constant 0 : index
    %c0_76 = arith.constant 0 : index
    %128 = vector.load %arg11[%c0_75, %c0_76] : memref<1x16xf32, #tpu.memory_space<vmem>>, vector<1x16xf32>
    %129 = vector.broadcast %128 : vector<1x16xf32> to vector<16x16xf32>
    %130 = arith.addf %127, %129 : vector<16x16xf32>
    %c0_77 = arith.constant 0 : index
    %c0_78 = arith.constant 0 : index
    %131 = vector.load %arg14[%c0_77, %c0_78] : memref<16x16xf32, #tpu.memory_space<vmem>>, vector<16x16xf32>
    tpu.vector_store %arg14[%c0_77, %c0_78], %130 {strides = array<i32>} : memref<16x16xf32, #tpu.memory_space<vmem>>, vector<16x16xf32>,
    return
  }
  func.func @transform_0(%arg0: i32) -> (i32, i32) {
    %c0_i32 = arith.constant 0 : i32
    %c0_i32_0 = arith.constant 0 : i32
    %c0_i32_1 = arith.constant 0 : i32
    return %c0_i32, %c0_i32_0 : i32, i32
  }
  func.func @transform_1(%arg0: i32) -> (i32, i32, i32) {
    %c0_i32 = arith.constant 0 : i32
    %c0_i32_0 = arith.constant 0 : i32
    %c0_i32_1 = arith.constant 0 : i32
    %c0_i32_2 = arith.constant 0 : i32
    return %c0_i32, %c0_i32_0, %c0_i32_1 : i32, i32, i32
  }
  func.func @transform_2(%arg0: i32) -> (i32, i32, i32) {
    %c0_i32 = arith.constant 0 : i32
    %c0_i32_0 = arith.constant 0 : i32
    %c0_i32_1 = arith.constant 0 : i32
    %c0_i32_2 = arith.constant 0 : i32
    return %c0_i32, %c0_i32_0, %c0_i32_1 : i32, i32, i32
  }
  func.func @transform_3(%arg0: i32) -> (i32, i32, i32) {
    %c0_i32 = arith.constant 0 : i32
    %c0_i32_0 = arith.constant 0 : i32
    %c0_i32_1 = arith.constant 0 : i32
    %c0_i32_2 = arith.constant 0 : i32
    return %c0_i32, %c0_i32_0, %c0_i32_1 : i32, i32, i32
  }
  func.func @transform_4(%arg0: i32) -> (i32, i32, i32) {
    %c0_i32 = arith.constant 0 : i32
    %c0_i32_0 = arith.constant 0 : i32
    %c0_i32_1 = arith.constant 0 : i32
    %c0_i32_2 = arith.constant 0 : i32
    return %c0_i32, %c0_i32_0, %c0_i32_1 : i32, i32, i32
  }
  func.func @transform_5(%arg0: i32) -> (i32, i32) {
    %c0_i32 = arith.constant 0 : i32
    %c0_i32_0 = arith.constant 0 : i32
    %c0_i32_1 = arith.constant 0 : i32
    return %c0_i32, %c0_i32_0 : i32, i32
  }
  func.func @transform_6(%arg0: i32) -> (i32, i32) {
    %c0_i32 = arith.constant 0 : i32
    %c0_i32_0 = arith.constant 0 : i32
    %c0_i32_1 = arith.constant 0 : i32
    return %c0_i32, %c0_i32_0 : i32, i32
  }
  func.func @transform_7(%arg0: i32) -> (i32, i32) {
    %c0_i32 = arith.constant 0 : i32
    %c0_i32_0 = arith.constant 0 : i32
    %c0_i32_1 = arith.constant 0 : i32
    return %c0_i32, %c0_i32_0 : i32, i32
  }
  func.func @transform_8(%arg0: i32) -> (i32, i32) {
    %c0_i32 = arith.constant 0 : i32
    %c0_i32_0 = arith.constant 0 : i32
    %c0_i32_1 = arith.constant 0 : i32
    return %c0_i32, %c0_i32_0 : i32, i32
  }
  func.func @transform_9(%arg0: i32) -> (i32, i32) {
    %c0_i32 = arith.constant 0 : i32
    %c0_i32_0 = arith.constant 0 : i32
    %c0_i32_1 = arith.constant 0 : i32
    return %c0_i32, %c0_i32_0 : i32, i32
  }
  func.func @transform_10(%arg0: i32) -> (i32, i32) {
    %c0_i32 = arith.constant 0 : i32
    %c0_i32_0 = arith.constant 0 : i32
    %c0_i32_1 = arith.constant 0 : i32
    return %c0_i32, %c0_i32_0 : i32, i32
  }
  func.func @transform_11(%arg0: i32) -> (i32, i32) {
    %c0_i32 = arith.constant 0 : i32
    %c0_i32_0 = arith.constant 0 : i32
    %c0_i32_1 = arith.constant 0 : i32
    return %c0_i32, %c0_i32_0 : i32, i32
  }
  func.func @transform_12(%arg0: i32) -> (i32, i32) {
    %c0_i32 = arith.constant 0 : i32
    %c0_i32_0 = arith.constant 0 : i32
    %c0_i32_1 = arith.constant 0 : i32
    return %c0_i32, %c0_i32_0 : i32, i32
  }
  func.func @transform_13(%arg0: i32) -> (i32, i32) {
    %c0_i32 = arith.constant 0 : i32
    %c0_i32_0 = arith.constant 0 : i32
    %c0_i32_1 = arith.constant 0 : i32
    return %c0_i32, %c0_i32_0 : i32, i32
  }
}

</mosaic_0001>

<llo_original>
// kernel: echo_block.1
$region0: #{echo_block.1}
  #allocation0 [shape = 'u32[]', space=smem, size = 0x4, offset = 0x4, fixed_abs, tag = 'smem constant byte address 0x4 - core index']
  #allocation1 [shape = 'u32[144,128]{1,0:T(1,128)}', space=vmem, size = 0x12000, scoped, tag = 'internal scratch']
  %s0 = inlined_call_operand.vmem [shape: f32[16,32], index: 0, kind: input, shape index: {}]
  %s1 = inlined_call_operand.vmem [shape: f32[2,32,16], index: 1, kind: input, shape index: {}]
  %s2 = inlined_call_operand.vmem [shape: f32[2,32,16], index: 2, kind: input, shape index: {}]
  %s3 = inlined_call_operand.vmem [shape: f32[2,32,16], index: 3, kind: input, shape index: {}]
  %s4 = inlined_call_operand.vmem [shape: f32[2,16,32], index: 4, kind: input, shape index: {}]
  %s5 = inlined_call_operand.vmem [shape: f32[2,16], index: 5, kind: input, shape index: {}]
  %s6 = inlined_call_operand.vmem [shape: f32[2,16], index: 6, kind: input, shape index: {}]
  %s7 = inlined_call_operand.vmem [shape: f32[32,128], index: 7, kind: input, shape index: {}]
  %s8 = inlined_call_operand.vmem [shape: f32[1,128], index: 8, kind: input, shape index: {}]
  %s9 = inlined_call_operand.vmem [shape: f32[128,16], index: 9, kind: input, shape index: {}]
  %s10 = inlined_call_operand.vmem [shape: f32[1,16], index: 10, kind: input, shape index: {}]
  %s11 = inlined_call_operand.vmem [shape: f32[32,16], index: 11, kind: input, shape index: {}]
  %s12 = inlined_call_operand.vmem [shape: f32[16,16], index: 12, kind: input, shape index: {}]
  %s13 = inlined_call_operand.hbm [shape: f32[16,16], index: 13, kind: output, shape index: {}]
  %s14 = sld [smem:[#allocation0]]
  $region62: #{echo_block.1} parent=0
    _
  %s16 = ssub.s32 1, %s14
  %s17 = scalar_select 0, %s16, %s14
  $region1: #{echo_block.1} parent=0
    #allocation2 [shape = 'u8[8192]{0}', space=vmem, size = 0x2000, scoped, tag = 'output window, operand 0, single buffered']
    #allocation3 [shape = 's32[1]{0}', space=sflag, size = 0x4, scoped, tag = 'scoped memory for echo_block.1']
    %18 = vsyncpa [#allocation3], 0
    // Predicated region
    $region2: #{echo_block.1} parent=1 // pred_check
      _
    $region3: #{echo_block.1} parent=1 // pred_check_branch
      %20 = sbr.rel (0) target = $region5
    $region4: #{echo_block.1} parent=1 // pred_region
      _
    $region5: #{echo_block.1} parent=1 // pred_fallthru
      _
    // Predicated region
    $region6: #{echo_block.1} parent=1 // pred_check
      _
    $region7: #{echo_block.1} parent=1 // pred_check_branch
      %22 = sbr.rel (0) target = $region9
    $region8: #{echo_block.1} parent=1 // pred_region
      _
    $region9: #{echo_block.1} parent=1 // pred_fallthru
      _
    // Predicated region
    $region10: #{echo_block.1} parent=1 // pred_check
      _
    $region11: #{echo_block.1} parent=1 // pred_check_branch
      %24 = sbr.rel (0) target = $region13
    $region12: #{echo_block.1} parent=1 // pred_region
      _
    $region13: #{echo_block.1} parent=1 // pred_fallthru
      _
    // Predicated region
    $region14: #{echo_block.1} parent=1 // pred_check
      _
    $region15: #{echo_block.1} parent=1 // pred_check_branch
      %26 = sbr.rel (0) target = $region17
    $region16: #{echo_block.1} parent=1 // pred_region
      _
    $region17: #{echo_block.1} parent=1 // pred_fallthru
      _
    // Predicated region
    $region18: #{echo_block.1} parent=1 // pred_check
      _
    $region19: #{echo_block.1} parent=1 // pred_check_branch
      %28 = sbr.rel (0) target = $region21
    $region20: #{echo_block.1} parent=1 // pred_region
      _
    $region21: #{echo_block.1} parent=1 // pred_fallthru
      _
    // Predicated region
    $region22: #{echo_block.1} parent=1 // pred_check
      _
    $region23: #{echo_block.1} parent=1 // pred_check_branch
      %30 = sbr.rel (0) target = $region25
    $region24: #{echo_block.1} parent=1 // pred_region
      _
    $region25: #{echo_block.1} parent=1 // pred_fallthru
      _
    // Predicated region
    $region26: #{echo_block.1} parent=1 // pred_check
      _
    $region27: #{echo_block.1} parent=1 // pred_check_branch
      %32 = sbr.rel (0) target = $region29
    $region28: #{echo_block.1} parent=1 // pred_region
      _
    $region29: #{echo_block.1} parent=1 // pred_fallthru
      _
    // Predicated region
    $region30: #{echo_block.1} parent=1 // pred_check
      _
    $region31: #{echo_block.1} parent=1 // pred_check_branch
      %34 = sbr.rel (0) target = $region33
    $region32: #{echo_block.1} parent=1 // pred_region
      _
    $region33: #{echo_block.1} parent=1 // pred_fallthru
      _
    // Predicated region
    $region34: #{echo_block.1} parent=1 // pred_check
      _
    $region35: #{echo_block.1} parent=1 // pred_check_branch
      %36 = sbr.rel (0) target = $region37
    $region36: #{echo_block.1} parent=1 // pred_region
      _
    $region37: #{echo_block.1} parent=1 // pred_fallthru
      _
    // Predicated region
    $region38: #{echo_block.1} parent=1 // pred_check
      _
    $region39: #{echo_block.1} parent=1 // pred_check_branch
      %38 = sbr.rel (0) target = $region41
    $region40: #{echo_block.1} parent=1 // pred_region
      _
    $region41: #{echo_block.1} parent=1 // pred_fallthru
      _
    // Predicated region
    $region42: #{echo_block.1} parent=1 // pred_check
      _
    $region43: #{echo_block.1} parent=1 // pred_check_branch
      %40 = sbr.rel (0) target = $region45
    $region44: #{echo_block.1} parent=1 // pred_region
      _
    $region45: #{echo_block.1} parent=1 // pred_fallthru
      _
    // Predicated region
    $region46: #{echo_block.1} parent=1 // pred_check
      _
    $region47: #{echo_block.1} parent=1 // pred_check_branch
      %42 = sbr.rel (0) target = $region49
    $region48: #{echo_block.1} parent=1 // pred_region
      _
    $region49: #{echo_block.1} parent=1 // pred_fallthru
      _
    // Predicated region
    $region50: #{echo_block.1} parent=1 // pred_check
      _
    $region51: #{echo_block.1} parent=1 // pred_check_branch
      %44 = sbr.rel (0) target = $region53
    $region52: #{echo_block.1} parent=1 // pred_region
      _
    $region53: #{echo_block.1} parent=1 // pred_fallthru
      _
    %v45 = vld [vmem:[%s0] sm:$0xff]
    %v46 = vld [vmem:[%s0 + $0x8] sm:$0xff]
    %v47 = vld [vmem:[%s12] sm:$0xff]
    %v48 = vld [vmem:[%s12 + $0x8] sm:$0xff]
    %v49 = vld [vmem:[%s1] sm:$0xff]
    %v50 = vld [vmem:[%s1 + $0x8] sm:$0xff]
    %v51 = vld [vmem:[%s1 + $0x10] sm:$0xff]
    %v52 = vld [vmem:[%s1 + $0x18] sm:$0xff]
    %vm53 = vcmask 261120
    %v55 = vsel %vm53, %v45, 0
    %v58 = vsel %vm53, %v46, 0
    %60 = vmatprep.subr.mxu0 0.0
    %61 = vmatpush1.msra.mxu0 %v49
    %62 = vmatprep.subr.mxu0 0.0
    %63 = vmatpush1.msra.mxu0 %v50
    %64 = vmatprep.subr.mxu0 0.0
    %65 = vmatpush1.msra.mxu0 %v51
    %66 = vmatprep.subr.mxu0 0.0
    %67 = vmatpush1.msra.mxu0 %v52
    %68 = vmatprep.subr.mxu0 0.0
    %69 = vmatpush1.msra.mxu0 0.0
    %70 = vmatprep.subr.mxu0 0.0
    %71 = vmatpush1.msra.mxu0 0.0
    %72 = vmatprep.subr.mxu0 0.0
    %73 = vmatpush1.msra.mxu0 0.0
    %74 = vmatprep.subr.mxu0 0.0
    %75 = vmatpush1.msra.mxu0 0.0
    %76 = vmatprep.subr.mxu0 0.0
    %77 = vmatpush1.msra.mxu0 0.0
    %78 = vmatprep.subr.mxu0 0.0
    %79 = vmatpush1.msra.mxu0 0.0
    %80 = vmatprep.subr.mxu0 0.0
    %81 = vmatpush1.msra.mxu0 0.0
    %82 = vmatprep.subr.mxu0 0.0
    %83 = vmatpush1.msra.mxu0 0.0
    %84 = vmatprep.subr.mxu0 0.0
    %85 = vmatpush1.msra.mxu0 0.0
    %86 = vmatprep.subr.mxu0 0.0
    %87 = vmatpush1.msra.mxu0 0.0
    %88 = vmatprep.subr.mxu0 0.0
    %89 = vmatpush1.msra.mxu0 0.0
    %90 = vmatprep.subr.mxu0 0.0
    %91 = vmatpush1.msra.mxu0 0.0
    %92 = vmatprep.subr.mxu0 0.0
    %93 = vmatpush1.msra.mxu0 0.0
    %94 = vmatprep.subr.mxu0 0.0
    %95 = vmatpush1.msra.mxu0 0.0
    %96 = vmatprep.subr.mxu0 0.0
    %97 = vmatpush1.msra.mxu0 0.0
    %98 = vmatprep.subr.mxu0 0.0
    %99 = vmatpush1.msra.mxu0 0.0
    %100 = vmatprep.subr.mxu0 0.0
    %101 = vmatpush1.msra.mxu0 0.0
    %102 = vmatprep.subr.mxu0 0.0
    %103 = vmatpush1.msra.mxu0 0.0
    %104 = vmatprep.subr.mxu0 0.0
    %105 = vmatpush1.msra.mxu0 0.0
    %106 = vmatprep.subr.mxu0 0.0
    %107 = vmatpush1.msra.mxu0 0.0
    %108 = vmatprep.subr.mxu0 0.0
    %109 = vmatpush1.msra.mxu0 0.0
    %110 = vmatprep.subr.mxu0 0.0
    %111 = vmatpush1.msra.mxu0 0.0
    %112 = vmatprep.subr.mxu0 0.0
    %113 = vmatpush1.msra.mxu0 0.0
    %114 = vmatprep.subr.mxu0 0.0
    %115 = vmatpush1.msra.mxu0 0.0
    %116 = vmatprep.subr.mxu0 0.0
    %117 = vmatpush1.msra.mxu0 0.0
    %118 = vmatprep.subr.mxu0 0.0
    %119 = vmatpush1.msra.mxu0 0.0
    %120 = vmatprep.subr.mxu0 0.0
    %121 = vmatpush1.msra.mxu0 0.0
    %122 = vmatprep.subr.mxu0 0.0
    %123 = vmatpush1.msra.mxu0 0.0
    %124 = vmatprep.mubr.f32.mxu0 0.0
    %125 = vmatmul.mubr.f32.gmra.mrb[0].mxu0 %v55
    %v126 = vpop.f32.mrb[0].mxu0
    %v127 = vadd.f32 0.0, %v126
    %v128 = vpop.f32.mrb[0].mxu0
    %129 = vmatprep.mubr.f32.mxu0 0.0
    %130 = vmatmul.mubr.f32.gmra.mrb[0].mxu0 %v58
    %v131 = vpop.f32.mrb[0].mxu0
    %v132 = vadd.f32 0.0, %v131
    %v133 = vpop.f32.mrb[0].mxu0
    %134 = vdwg.mxu0
    %v135 = vld [vmem:[%s2] sm:$0xff]
    %v136 = vld [vmem:[%s2 + $0x8] sm:$0xff]
    %v137 = vld [vmem:[%s2 + $0x10] sm:$0xff]
    %v138 = vld [vmem:[%s2 + $0x18] sm:$0xff]
    %139 = vmatprep.subr.mxu0 0.0
    %140 = vmatpush1.msra.mxu0 %v135
    %141 = vmatprep.subr.mxu0 0.0
    %142 = vmatpush1.msra.mxu0 %v136
    %143 = vmatprep.subr.mxu0 0.0
    %144 = vmatpush1.msra.mxu0 %v137
    %145 = vmatprep.subr.mxu0 0.0
    %146 = vmatpush1.msra.mxu0 %v138
    %147 = vmatprep.subr.mxu0 0.0
    %148 = vmatpush1.msra.mxu0 0.0
    %149 = vmatprep.subr.mxu0 0.0
    %150 = vmatpush1.msra.mxu0 0.0
    %151 = vmatprep.subr.mxu0 0.0
    %152 = vmatpush1.msra.mxu0 0.0
    %153 = vmatprep.subr.mxu0 0.0
    %154 = vmatpush1.msra.mxu0 0.0
    %155 = vmatprep.subr.mxu0 0.0
    %156 = vmatpush1.msra.mxu0 0.0
    %157 = vmatprep.subr.mxu0 0.0
    %158 = vmatpush1.msra.mxu0 0.0
    %159 = vmatprep.subr.mxu0 0.0
    %160 = vmatpush1.msra.mxu0 0.0
    %161 = vmatprep.subr.mxu0 0.0
    %162 = vmatpush1.msra.mxu0 0.0
    %163 = vmatprep.subr.mxu0 0.0
    %164 = vmatpush1.msra.mxu0 0.0
    %165 = vmatprep.subr.mxu0 0.0
    %166 = vmatpush1.msra.mxu0 0.0
    %167 = vmatprep.subr.mxu0 0.0
    %168 = vmatpush1.msra.mxu0 0.0
    %169 = vmatprep.subr.mxu0 0.0
    %170 = vmatpush1.msra.mxu0 0.0
    %171 = vmatprep.subr.mxu0 0.0
    %172 = vmatpush1.msra.mxu0 0.0
    %173 = vmatprep.subr.mxu0 0.0
    %174 = vmatpush1.msra.mxu0 0.0
    %175 = vmatprep.subr.mxu0 0.0
    %176 = vmatpush1.msra.mxu0 0.0
    %177 = vmatprep.subr.mxu0 0.0
    %178 = vmatpush1.msra.mxu0 0.0
    %179 = vmatprep.subr.mxu0 0.0
    %180 = vmatpush1.msra.mxu0 0.0
    %181 = vmatprep.subr.mxu0 0.0
    %182 = vmatpush1.msra.mxu0 0.0
    %183 = vmatprep.subr.mxu0 0.0
    %184 = vmatpush1.msra.mxu0 0.0
    %185 = vmatprep.subr.mxu0 0.0
    %186 = vmatpush1.msra.mxu0 0.0
    %187 = vmatprep.subr.mxu0 0.0
    %188 = vmatpush1.msra.mxu0 0.0
    %189 = vmatprep.subr.mxu0 0.0
    %190 = vmatpush1.msra.mxu0 0.0
    %191 = vmatprep.subr.mxu0 0.0
    %192 = vmatpush1.msra.mxu0 0.0
    %193 = vmatprep.subr.mxu0 0.0
    %194 = vmatpush1.msra.mxu0 0.0
    %195 = vmatprep.subr.mxu0 0.0
    %196 = vmatpush1.msra.mxu0 0.0
    %197 = vmatprep.subr.mxu0 0.0
    %198 = vmatpush1.msra.mxu0 0.0
    %199 = vmatprep.subr.mxu0 0.0
    %200 = vmatpush1.msra.mxu0 0.0
    %201 = vmatprep.subr.mxu0 0.0
    %202 = vmatpush1.msra.mxu0 0.0
    %203 = vmatprep.mubr.f32.mxu0 0.0
    %204 = vmatmul.mubr.f32.gmra.mrb[0].mxu0 %v55
    %v205 = vpop.f32.mrb[0].mxu0
    %v206 = vadd.f32 0.0, %v205
    %v207 = vpop.f32.mrb[0].mxu0
    %208 = vmatprep.mubr.f32.mxu0 0.0
    %209 = vmatmul.mubr.f32.gmra.mrb[0].mxu0 %v58
    %v210 = vpop.f32.mrb[0].mxu0
    %v211 = vadd.f32 0.0, %v210
    %v212 = vpop.f32.mrb[0].mxu0
    %213 = vdwg.mxu0
    %v214 = vld [vmem:[%s3] sm:$0xff]
    %v215 = vld [vmem:[%s3 + $0x8] sm:$0xff]
    %v216 = vld [vmem:[%s3 + $0x10] sm:$0xff]
    %v217 = vld [vmem:[%s3 + $0x18] sm:$0xff]
    %218 = vmatprep.subr.mxu0 0.0
    %219 = vmatpush1.msra.mxu0 %v214
    %220 = vmatprep.subr.mxu0 0.0
    %221 = vmatpush1.msra.mxu0 %v215
    %222 = vmatprep.subr.mxu0 0.0
    %223 = vmatpush1.msra.mxu0 %v216
    %224 = vmatprep.subr.mxu0 0.0
    %225 = vmatpush1.msra.mxu0 %v217
    %226 = vmatprep.subr.mxu0 0.0
    %227 = vmatpush1.msra.mxu0 0.0
    %228 = vmatprep.subr.mxu0 0.0
    %229 = vmatpush1.msra.mxu0 0.0
    %230 = vmatprep.subr.mxu0 0.0
    %231 = vmatpush1.msra.mxu0 0.0
    %232 = vmatprep.subr.mxu0 0.0
    %233 = vmatpush1.msra.mxu0 0.0
    %234 = vmatprep.subr.mxu0 0.0
    %235 = vmatpush1.msra.mxu0 0.0
    %236 = vmatprep.subr.mxu0 0.0
    %237 = vmatpush1.msra.mxu0 0.0
    %238 = vmatprep.subr.mxu0 0.0
    %239 = vmatpush1.msra.mxu0 0.0
    %240 = vmatprep.subr.mxu0 0.0
    %241 = vmatpush1.msra.mxu0 0.0
    %242 = vmatprep.subr.mxu0 0.0
    %243 = vmatpush1.msra.mxu0 0.0
    %244 = vmatprep.subr.mxu0 0.0
    %245 = vmatpush1.msra.mxu0 0.0
    %246 = vmatprep.subr.mxu0 0.0
    %247 = vmatpush1.msra.mxu0 0.0
    %248 = vmatprep.subr.mxu0 0.0
    %249 = vmatpush1.msra.mxu0 0.0
    %250 = vmatprep.subr.mxu0 0.0
    %251 = vmatpush1.msra.mxu0 0.0
    %252 = vmatprep.subr.mxu0 0.0
    %253 = vmatpush1.msra.mxu0 0.0
    %254 = vmatprep.subr.mxu0 0.0
    %255 = vmatpush1.msra.mxu0 0.0
    %256 = vmatprep.subr.mxu0 0.0
    %257 = vmatpush1.msra.mxu0 0.0
    %258 = vmatprep.subr.mxu0 0.0
    %259 = vmatpush1.msra.mxu0 0.0
    %260 = vmatprep.subr.mxu0 0.0
    %261 = vmatpush1.msra.mxu0 0.0
    %262 = vmatprep.subr.mxu0 0.0
    %263 = vmatpush1.msra.mxu0 0.0
    %264 = vmatprep.subr.mxu0 0.0
    %265 = vmatpush1.msra.mxu0 0.0
    %266 = vmatprep.subr.mxu0 0.0
    %267 = vmatpush1.msra.mxu0 0.0
    %268 = vmatprep.subr.mxu0 0.0
    %269 = vmatpush1.msra.mxu0 0.0
    %270 = vmatprep.subr.mxu0 0.0
    %271 = vmatpush1.msra.mxu0 0.0
    %272 = vmatprep.subr.mxu0 0.0
    %273 = vmatpush1.msra.mxu0 0.0
    %274 = vmatprep.subr.mxu0 0.0
    %275 = vmatpush1.msra.mxu0 0.0
    %276 = vmatprep.subr.mxu0 0.0
    %277 = vmatpush1.msra.mxu0 0.0
    %278 = vmatprep.subr.mxu0 0.0
    %279 = vmatpush1.msra.mxu0 0.0
    %280 = vmatprep.subr.mxu0 0.0
    %281 = vmatpush1.msra.mxu0 0.0
    %282 = vmatprep.mubr.f32.mxu0 0.0
    %283 = vmatmul.mubr.f32.gmra.mrb[0].mxu0 %v55
    %v284 = vpop.f32.mrb[0].mxu0
    %v285 = vadd.f32 0.0, %v284
    %v286 = vpop.f32.mrb[0].mxu0
    %287 = vmatprep.mubr.f32.mxu0 0.0
    %288 = vmatmul.mubr.f32.gmra.mrb[0].mxu0 %v58
    %v289 = vpop.f32.mrb[0].mxu0
    %v290 = vadd.f32 0.0, %v289
    %v291 = vpop.f32.mrb[0].mxu0
    %292 = vdwg.mxu0
    %v293 = vmul.f32 %v127, %v127
    %v294 = vmul.f32 %v132, %v132
    %vm295 = vcmask 130048
    %v296 = vsel %vm295, %v293, 0.0
    %297 = vadd.xlane.f32.xlu0 %v296
    %v298 = vpop.xlane.xlu0 %297
    %v299 = vsel %vm295, %v294, 0.0
    %300 = vadd.xlane.f32.xlu0 %v299
    %v301 = vpop.xlane.xlu0 %300
    %v302 = vadd.f32 %v298, 1e-12
    %v303 = vadd.f32 %v301, 1e-12
    %v304 = vrsqrt.pop %v302
    %v305 = vrsqrt.pop %v303
    %v306 = vmul.f32 %v127, %v304
    %v307 = vmul.f32 %v132, %v305
    %v308 = vmul.f32 %v206, %v206
    %v309 = vmul.f32 %v211, %v211
    %v310 = vsel %vm295, %v308, 0.0
    %311 = vadd.xlane.f32.xlu0 %v310
    %v312 = vpop.xlane.xlu0 %311
    %v313 = vsel %vm295, %v309, 0.0
    %314 = vadd.xlane.f32.xlu0 %v313
    %v315 = vpop.xlane.xlu0 %314
    %v316 = vadd.f32 %v312, 1e-12
    %v317 = vadd.f32 %v315, 1e-12
    %v318 = vrsqrt.pop %v316
    %v319 = vrsqrt.pop %v317
    %v320 = vmul.f32 %v206, %v318
    %v321 = vmul.f32 %v211, %v319
    %v322 = vld [vmem:[%s5] sm:$0x1]
    %v323 = vlaneseq
    %v324 = vshrl.u32 %v323, 7
    %v325 = vsub.s32 0, %v324
    %v326 = vrot.slane %v322, %v325
    %v327 = vmul.f32 %v306, %v326
    %v328 = vmul.f32 %v307, %v326
    %v329 = vld [vmem:[%s6] sm:$0x1]
    %v330 = vlaneseq
    %v331 = vshrl.u32 %v330, 7
    %v332 = vsub.s32 0, %v331
    %v333 = vrot.slane %v329, %v332
    %v334 = vmul.f32 %v320, %v333
    %v335 = vmul.f32 %v321, %v333
    %v337 = vsel %vm295, %v327, 0
    %v340 = vsel %vm295, %v328, 0
    %v343 = vsel %vm295, %v334, 0
    %v346 = vsel %vm295, %v335, 0
    %348 = vmatprep.subr.mxu0 0.0
    %349 = vmatpush1.xpose.msra.mxu0 %v343
    %350 = vmatprep.subr.mxu0 0.0
    %351 = vmatpush1.xpose.msra.mxu0 %v346
    %352 = vmatprep.subr.mxu0 0.0
    %353 = vmatpush1.xpose.msra.mxu0 0.0
    %354 = vmatprep.subr.mxu0 0.0
    %355 = vmatpush1.xpose.msra.mxu0 0.0
    %356 = vmatprep.subr.mxu0 0.0
    %357 = vmatpush1.xpose.msra.mxu0 0.0
    %358 = vmatprep.subr.mxu0 0.0
    %359 = vmatpush1.xpose.msra.mxu0 0.0
    %360 = vmatprep.subr.mxu0 0.0
    %361 = vmatpush1.xpose.msra.mxu0 0.0
    %362 = vmatprep.subr.mxu0 0.0
    %363 = vmatpush1.xpose.msra.mxu0 0.0
    %364 = vmatprep.subr.mxu0 0.0
    %365 = vmatpush1.xpose.msra.mxu0 0.0
    %366 = vmatprep.subr.mxu0 0.0
    %367 = vmatpush1.xpose.msra.mxu0 0.0
    %368 = vmatprep.subr.mxu0 0.0
    %369 = vmatpush1.xpose.msra.mxu0 0.0
    %370 = vmatprep.subr.mxu0 0.0
    %371 = vmatpush1.xpose.msra.mxu0 0.0
    %372 = vmatprep.subr.mxu0 0.0
    %373 = vmatpush1.xpose.msra.mxu0 0.0
    %374 = vmatprep.subr.mxu0 0.0
    %375 = vmatpush1.xpose.msra.mxu0 0.0
    %376 = vmatprep.subr.mxu0 0.0
    %377 = vmatpush1.xpose.msra.mxu0 0.0
    %378 = vmatprep.subr.mxu0 0.0
    %379 = vmatpush1.xpose.msra.mxu0 0.0
    %380 = vmatprep.subr.mxu0 0.0
    %381 = vmatpush1.xpose.msra.mxu0 0.0
    %382 = vmatprep.subr.mxu0 0.0
    %383 = vmatpush1.xpose.msra.mxu0 0.0
    %384 = vmatprep.subr.mxu0 0.0
    %385 = vmatpush1.xpose.msra.mxu0 0.0
    %386 = vmatprep.subr.mxu0 0.0
    %387 = vmatpush1.xpose.msra.mxu0 0.0
    %388 = vmatprep.subr.mxu0 0.0
    %389 = vmatpush1.xpose.msra.mxu0 0.0
    %390 = vmatprep.subr.mxu0 0.0
    %391 = vmatpush1.xpose.msra.mxu0 0.0
    %392 = vmatprep.subr.mxu0 0.0
    %393 = vmatpush1.xpose.msra.mxu0 0.0
    %394 = vmatprep.subr.mxu0 0.0
    %395 = vmatpush1.xpose.msra.mxu0 0.0
    %396 = vmatprep.subr.mxu0 0.0
    %397 = vmatpush1.xpose.msra.mxu0 0.0
    %398 = vmatprep.subr.mxu0 0.0
    %399 = vmatpush1.xpose.msra.mxu0 0.0
    %400 = vmatprep.subr.mxu0 0.0
    %401 = vmatpush1.xpose.msra.mxu0 0.0
    %402 = vmatprep.subr.mxu0 0.0
    %403 = vmatpush1.xpose.msra.mxu0 0.0
    %404 = vmatprep.subr.mxu0 0.0
    %405 = vmatpush1.xpose.msra.mxu0 0.0
    %406 = vmatprep.subr.mxu0 0.0
    %407 = vmatpush1.xpose.msra.mxu0 0.0
    %408 = vmatprep.subr.mxu0 0.0
    %409 = vmatpush1.xpose.msra.mxu0 0.0
    %410 = vmatprep.subr.mxu0 0.0
    %411 = vmatpush1.xpose.msra.mxu0 0.0
    %412 = vmatprep.mubr.f32.mxu0 0.0
    %413 = vmatmul.mubr.f32.gmra.mrb[0].mxu0 %v337
    %v414 = vpop.f32.mrb[0].mxu0
    %v415 = vadd.f32 0.0, %v414
    %v416 = vpop.f32.mrb[0].mxu0
    %417 = vmatprep.mubr.f32.mxu0 0.0
    %418 = vmatmul.mubr.f32.gmra.mrb[0].mxu0 %v340
    %v419 = vpop.f32.mrb[0].mxu0
    %v420 = vadd.f32 0.0, %v419
    %v421 = vpop.f32.mrb[0].mxu0
    %422 = vdwg.mxu0
    %v423 = vmul.f32 %v415, 10.0
    %v424 = vmul.f32 %v420, 10.0
    %v425 = vadd.f32 %v423, %v47
    %v426 = vadd.f32 %v424, %v48
    %v427 = vsel %vm295, %v425, -inf
    %428 = vmax.xlane.f32.xlu0 %v427
    %v429 = vpop.xlane.xlu0 %428
    %v430 = vsel %vm295, %v426, -inf
    %431 = vmax.xlane.f32.xlu0 %v430
    %v432 = vpop.xlane.xlu0 %431
    %v433 = vsub.f32 %v425, %v429
    %v434 = vsub.f32 %v426, %v432
    %v435 = vmul.f32 %v433, 1.442695
    %v436 = vpow.pop %v435
    %v437 = vmul.f32 %v434, 1.442695
    %v438 = vpow.pop %v437
    %v439 = vsel %vm295, %v436, 0.0
    %440 = vadd.xlane.f32.xlu0 %v439
    %v441 = vpop.xlane.xlu0 %440
    %v442 = vsel %vm295, %v438, 0.0
    %443 = vadd.xlane.f32.xlu0 %v442
    %v444 = vpop.xlane.xlu0 %443
    %v445 = vrcp.pop %v441
    %v446 = vrcp.pop %v444
    %v447 = vmul.f32 %v436, %v445
    %v448 = vmul.f32 %v438, %v446
    %v450 = vsel %vm295, %v447, 0
    %v453 = vsel %vm295, %v448, 0
    %455 = vmatprep.subr.mxu0 0.0
    %456 = vmatpush1.msra.mxu0 %v285
    %457 = vmatprep.subr.mxu0 0.0
    %458 = vmatpush1.msra.mxu0 %v290
    %459 = vmatprep.subr.mxu0 0.0
    %460 = vmatpush1.msra.mxu0 0.0
    %461 = vmatprep.subr.mxu0 0.0
    %462 = vmatpush1.msra.mxu0 0.0
    %463 = vmatprep.subr.mxu0 0.0
    %464 = vmatpush1.msra.mxu0 0.0
    %465 = vmatprep.subr.mxu0 0.0
    %466 = vmatpush1.msra.mxu0 0.0
    %467 = vmatprep.subr.mxu0 0.0
    %468 = vmatpush1.msra.mxu0 0.0
    %469 = vmatprep.subr.mxu0 0.0
    %470 = vmatpush1.msra.mxu0 0.0
    %471 = vmatprep.subr.mxu0 0.0
    %472 = vmatpush1.msra.mxu0 0.0
    %473 = vmatprep.subr.mxu0 0.0
    %474 = vmatpush1.msra.mxu0 0.0
    %475 = vmatprep.subr.mxu0 0.0
    %476 = vmatpush1.msra.mxu0 0.0
    %477 = vmatprep.subr.mxu0 0.0
    %478 = vmatpush1.msra.mxu0 0.0
    %479 = vmatprep.subr.mxu0 0.0
    %480 = vmatpush1.msra.mxu0 0.0
    %481 = vmatprep.subr.mxu0 0.0
    %482 = vmatpush1.msra.mxu0 0.0
    %483 = vmatprep.subr.mxu0 0.0
    %484 = vmatpush1.msra.mxu0 0.0
    %485 = vmatprep.subr.mxu0 0.0
    %486 = vmatpush1.msra.mxu0 0.0
    %487 = vmatprep.subr.mxu0 0.0
    %488 = vmatpush1.msra.mxu0 0.0
    %489 = vmatprep.subr.mxu0 0.0
    %490 = vmatpush1.msra.mxu0 0.0
    %491 = vmatprep.subr.mxu0 0.0
    %492 = vmatpush1.msra.mxu0 0.0
    %493 = vmatprep.subr.mxu0 0.0
    %494 = vmatpush1.msra.mxu0 0.0
    %495 = vmatprep.subr.mxu0 0.0
    %496 = vmatpush1.msra.mxu0 0.0
    %497 = vmatprep.subr.mxu0 0.0
    %498 = vmatpush1.msra.mxu0 0.0
    %499 = vmatprep.subr.mxu0 0.0
    %500 = vmatpush1.msra.mxu0 0.0
    %501 = vmatprep.subr.mxu0 0.0
    %502 = vmatpush1.msra.mxu0 0.0
    %503 = vmatprep.subr.mxu0 0.0
    %504 = vmatpush1.msra.mxu0 0.0
    %505 = vmatprep.subr.mxu0 0.0
    %506 = vmatpush1.msra.mxu0 0.0
    %507 = vmatprep.subr.mxu0 0.0
    %508 = vmatpush1.msra.mxu0 0.0
    %509 = vmatprep.subr.mxu0 0.0
    %510 = vmatpush1.msra.mxu0 0.0
    %511 = vmatprep.subr.mxu0 0.0
    %512 = vmatpush1.msra.mxu0 0.0
    %513 = vmatprep.subr.mxu0 0.0
    %514 = vmatpush1.msra.mxu0 0.0
    %515 = vmatprep.subr.mxu0 0.0
    %516 = vmatpush1.msra.mxu0 0.0
    %517 = vmatprep.subr.mxu0 0.0
    %518 = vmatpush1.msra.mxu0 0.0
    %519 = vmatprep.mubr.f32.mxu0 0.0
    %520 = vmatmul.mubr.f32.gmra.mrb[0].mxu0 %v450
    %v521 = vpop.f32.mrb[0].mxu0
    %v522 = vadd.f32 0.0, %v521
    %v523 = vpop.f32.mrb[0].mxu0
    %524 = vmatprep.mubr.f32.mxu0 0.0
    %525 = vmatmul.mubr.f32.gmra.mrb[0].mxu0 %v453
    %v526 = vpop.f32.mrb[0].mxu0
    %v527 = vadd.f32 0.0, %v526
    %v528 = vpop.f32.mrb[0].mxu0
    %529 = vdwg.mxu0
    %v530 = vld [vmem:[%s4] sm:$0xff]
    %v531 = vld [vmem:[%s4 + $0x8] sm:$0xff]
    %s532 = scalar_lea.vmem %s1, 32
    %v533 = vld [vmem:[%s532] sm:$0xff]
    %v534 = vld [vmem:[%s532 + $0x8] sm:$0xff]
    %v535 = vld [vmem:[%s532 + $0x10] sm:$0xff]
    %v536 = vld [vmem:[%s532 + $0x18] sm:$0xff]
    %537 = vmatprep.subr.mxu0 0.0
    %538 = vmatpush1.msra.mxu0 %v533
    %539 = vmatprep.subr.mxu0 0.0
    %540 = vmatpush1.msra.mxu0 %v534
    %541 = vmatprep.subr.mxu0 0.0
    %542 = vmatpush1.msra.mxu0 %v535
    %543 = vmatprep.subr.mxu0 0.0
    %544 = vmatpush1.msra.mxu0 %v536
    %545 = vmatprep.subr.mxu0 0.0
    %546 = vmatpush1.msra.mxu0 0.0
    %547 = vmatprep.subr.mxu0 0.0
    %548 = vmatpush1.msra.mxu0 0.0
    %549 = vmatprep.subr.mxu0 0.0
    %550 = vmatpush1.msra.mxu0 0.0
    %551 = vmatprep.subr.mxu0 0.0
    %552 = vmatpush1.msra.mxu0 0.0
    %553 = vmatprep.subr.mxu0 0.0
    %554 = vmatpush1.msra.mxu0 0.0
    %555 = vmatprep.subr.mxu0 0.0
    %556 = vmatpush1.msra.mxu0 0.0
    %557 = vmatprep.subr.mxu0 0.0
    %558 = vmatpush1.msra.mxu0 0.0
    %559 = vmatprep.subr.mxu0 0.0
    %560 = vmatpush1.msra.mxu0 0.0
    %561 = vmatprep.subr.mxu0 0.0
    %562 = vmatpush1.msra.mxu0 0.0
    %563 = vmatprep.subr.mxu0 0.0
    %564 = vmatpush1.msra.mxu0 0.0
    %565 = vmatprep.subr.mxu0 0.0
    %566 = vmatpush1.msra.mxu0 0.0
    %567 = vmatprep.subr.mxu0 0.0
    %568 = vmatpush1.msra.mxu0 0.0
    %569 = vmatprep.subr.mxu0 0.0
    %570 = vmatpush1.msra.mxu0 0.0
    %571 = vmatprep.subr.mxu0 0.0
    %572 = vmatpush1.msra.mxu0 0.0
    %573 = vmatprep.subr.mxu0 0.0
    %574 = vmatpush1.msra.mxu0 0.0
    %575 = vmatprep.subr.mxu0 0.0
    %576 = vmatpush1.msra.mxu0 0.0
    %577 = vmatprep.subr.mxu0 0.0
    %578 = vmatpush1.msra.mxu0 0.0
    %579 = vmatprep.subr.mxu0 0.0
    %580 = vmatpush1.msra.mxu0 0.0
    %581 = vmatprep.subr.mxu0 0.0
    %582 = vmatpush1.msra.mxu0 0.0
    %583 = vmatprep.subr.mxu0 0.0
    %584 = vmatpush1.msra.mxu0 0.0
    %585 = vmatprep.subr.mxu0 0.0
    %586 = vmatpush1.msra.mxu0 0.0
    %587 = vmatprep.subr.mxu0 0.0
    %588 = vmatpush1.msra.mxu0 0.0
    %589 = vmatprep.subr.mxu0 0.0
    %590 = vmatpush1.msra.mxu0 0.0
    %591 = vmatprep.subr.mxu0 0.0
    %592 = vmatpush1.msra.mxu0 0.0
    %593 = vmatprep.subr.mxu0 0.0
    %594 = vmatpush1.msra.mxu0 0.0
    %595 = vmatprep.subr.mxu0 0.0
    %596 = vmatpush1.msra.mxu0 0.0
    %597 = vmatprep.subr.mxu0 0.0
    %598 = vmatpush1.msra.mxu0 0.0
    %599 = vmatprep.subr.mxu0 0.0
    %600 = vmatpush1.msra.mxu0 0.0
    %601 = vmatprep.mubr.f32.mxu0 0.0
    %602 = vmatmul.mubr.f32.gmra.mrb[0].mxu0 %v55
    %v603 = vpop.f32.mrb[0].mxu0
    %v604 = vadd.f32 0.0, %v603
    %v605 = vpop.f32.mrb[0].mxu0
    %606 = vmatprep.mubr.f32.mxu0 0.0
    %607 = vmatmul.mubr.f32.gmra.mrb[0].mxu0 %v58
    %v608 = vpop.f32.mrb[0].mxu0
    %v609 = vadd.f32 0.0, %v608
    %v610 = vpop.f32.mrb[0].mxu0
    %611 = vdwg.mxu0
    %s612 = scalar_lea.vmem %s2, 32
    %v613 = vld [vmem:[%s612] sm:$0xff]
    %v614 = vld [vmem:[%s612 + $0x8] sm:$0xff]
    %v615 = vld [vmem:[%s612 + $0x10] sm:$0xff]
    %v616 = vld [vmem:[%s612 + $0x18] sm:$0xff]
    %617 = vmatprep.subr.mxu0 0.0
    %618 = vmatpush1.msra.mxu0 %v613
    %619 = vmatprep.subr.mxu0 0.0
    %620 = vmatpush1.msra.mxu0 %v614
    %621 = vmatprep.subr.mxu0 0.0
    %622 = vmatpush1.msra.mxu0 %v615
    %623 = vmatprep.subr.mxu0 0.0
    %624 = vmatpush1.msra.mxu0 %v616
    %625 = vmatprep.subr.mxu0 0.0
    %626 = vmatpush1.msra.mxu0 0.0
    %627 = vmatprep.subr.mxu0 0.0
    %628 = vmatpush1.msra.mxu0 0.0
    %629 = vmatprep.subr.mxu0 0.0
    %630 = vmatpush1.msra.mxu0 0.0
    %631 = vmatprep.subr.mxu0 0.0
    %632 = vmatpush1.msra.mxu0 0.0
    %633 = vmatprep.subr.mxu0 0.0
    %634 = vmatpush1.msra.mxu0 0.0
    %635 = vmatprep.subr.mxu0 0.0
    %636 = vmatpush1.msra.mxu0 0.0
    %637 = vmatprep.subr.mxu0 0.0
    %638 = vmatpush1.msra.mxu0 0.0
    %639 = vmatprep.subr.mxu0 0.0
    %640 = vmatpush1.msra.mxu0 0.0
    %641 = vmatprep.subr.mxu0 0.0
    %642 = vmatpush1.msra.mxu0 0.0
    %643 = vmatprep.subr.mxu0 0.0
    %644 = vmatpush1.msra.mxu0 0.0
    %645 = vmatprep.subr.mxu0 0.0
    %646 = vmatpush1.msra.mxu0 0.0
    %647 = vmatprep.subr.mxu0 0.0
    %648 = vmatpush1.msra.mxu0 0.0
    %649 = vmatprep.subr.mxu0 0.0
    %650 = vmatpush1.msra.mxu0 0.0
    %651 = vmatprep.subr.mxu0 0.0
    %652 = vmatpush1.msra.mxu0 0.0
    %653 = vmatprep.subr.mxu0 0.0
    %654 = vmatpush1.msra.mxu0 0.0
    %655 = vmatprep.subr.mxu0 0.0
    %656 = vmatpush1.msra.mxu0 0.0
    %657 = vmatprep.subr.mxu0 0.0
    %658 = vmatpush1.msra.mxu0 0.0
    %659 = vmatprep.subr.mxu0 0.0
    %660 = vmatpush1.msra.mxu0 0.0
    %661 = vmatprep.subr.mxu0 0.0
    %662 = vmatpush1.msra.mxu0 0.0
    %663 = vmatprep.subr.mxu0 0.0
    %664 = vmatpush1.msra.mxu0 0.0
    %665 = vmatprep.subr.mxu0 0.0
    %666 = vmatpush1.msra.mxu0 0.0
    %667 = vmatprep.subr.mxu0 0.0
    %668 = vmatpush1.msra.mxu0 0.0
    %669 = vmatprep.subr.mxu0 0.0
    %670 = vmatpush1.msra.mxu0 0.0
    %671 = vmatprep.subr.mxu0 0.0
    %672 = vmatpush1.msra.mxu0 0.0
    %673 = vmatprep.subr.mxu0 0.0
    %674 = vmatpush1.msra.mxu0 0.0
    %675 = vmatprep.subr.mxu0 0.0
    %676 = vmatpush1.msra.mxu0 0.0
    %677 = vmatprep.subr.mxu0 0.0
    %678 = vmatpush1.msra.mxu0 0.0
    %679 = vmatprep.subr.mxu0 0.0
    %680 = vmatpush1.msra.mxu0 0.0
    %681 = vmatprep.mubr.f32.mxu0 0.0
    %682 = vmatmul.mubr.f32.gmra.mrb[0].mxu0 %v55
    %v683 = vpop.f32.mrb[0].mxu0
    %v684 = vadd.f32 0.0, %v683
    %v685 = vpop.f32.mrb[0].mxu0
    %686 = vmatprep.mubr.f32.mxu0 0.0
    %687 = vmatmul.mubr.f32.gmra.mrb[0].mxu0 %v58
    %v688 = vpop.f32.mrb[0].mxu0
    %v689 = vadd.f32 0.0, %v688
    %v690 = vpop.f32.mrb[0].mxu0
    %691 = vdwg.mxu0
    %s692 = scalar_lea.vmem %s3, 32
    %v693 = vld [vmem:[%s692] sm:$0xff]
    %v694 = vld [vmem:[%s692 + $0x8] sm:$0xff]
    %v695 = vld [vmem:[%s692 + $0x10] sm:$0xff]
    %v696 = vld [vmem:[%s692 + $0x18] sm:$0xff]
    %697 = vmatprep.subr.mxu0 0.0
    %698 = vmatpush1.msra.mxu0 %v693
    %699 = vmatprep.subr.mxu0 0.0
    %700 = vmatpush1.msra.mxu0 %v694
    %701 = vmatprep.subr.mxu0 0.0
    %702 = vmatpush1.msra.mxu0 %v695
    %703 = vmatprep.subr.mxu0 0.0
    %704 = vmatpush1.msra.mxu0 %v696
    %705 = vmatprep.subr.mxu0 0.0
    %706 = vmatpush1.msra.mxu0 0.0
    %707 = vmatprep.subr.mxu0 0.0
    %708 = vmatpush1.msra.mxu0 0.0
    %709 = vmatprep.subr.mxu0 0.0
    %710 = vmatpush1.msra.mxu0 0.0
    %711 = vmatprep.subr.mxu0 0.0
    %712 = vmatpush1.msra.mxu0 0.0
    %713 = vmatprep.subr.mxu0 0.0
    %714 = vmatpush1.msra.mxu0 0.0
    %715 = vmatprep.subr.mxu0 0.0
    %716 = vmatpush1.msra.mxu0 0.0
    %717 = vmatprep.subr.mxu0 0.0
    %718 = vmatpush1.msra.mxu0 0.0
    %719 = vmatprep.subr.mxu0 0.0
    %720 = vmatpush1.msra.mxu0 0.0
    %721 = vmatprep.subr.mxu0 0.0
    %722 = vmatpush1.msra.mxu0 0.0
    %723 = vmatprep.subr.mxu0 0.0
    %724 = vmatpush1.msra.mxu0 0.0
    %725 = vmatprep.subr.mxu0 0.0
    %726 = vmatpush1.msra.mxu0 0.0
    %727 = vmatprep.subr.mxu0 0.0
    %728 = vmatpush1.msra.mxu0 0.0
    %729 = vmatprep.subr.mxu0 0.0
    %730 = vmatpush1.msra.mxu0 0.0
    %731 = vmatprep.subr.mxu0 0.0
    %732 = vmatpush1.msra.mxu0 0.0
    %733 = vmatprep.subr.mxu0 0.0
    %734 = vmatpush1.msra.mxu0 0.0
    %735 = vmatprep.subr.mxu0 0.0
    %736 = vmatpush1.msra.mxu0 0.0
    %737 = vmatprep.subr.mxu0 0.0
    %738 = vmatpush1.msra.mxu0 0.0
    %739 = vmatprep.subr.mxu0 0.0
    %740 = vmatpush1.msra.mxu0 0.0
    %741 = vmatprep.subr.mxu0 0.0
    %742 = vmatpush1.msra.mxu0 0.0
    %743 = vmatprep.subr.mxu0 0.0
    %744 = vmatpush1.msra.mxu0 0.0
    %745 = vmatprep.subr.mxu0 0.0
    %746 = vmatpush1.msra.mxu0 0.0
    %747 = vmatprep.subr.mxu0 0.0
    %748 = vmatpush1.msra.mxu0 0.0
    %749 = vmatprep.subr.mxu0 0.0
    %750 = vmatpush1.msra.mxu0 0.0
    %751 = vmatprep.subr.mxu0 0.0
    %752 = vmatpush1.msra.mxu0 0.0
    %753 = vmatprep.subr.mxu0 0.0
    %754 = vmatpush1.msra.mxu0 0.0
    %755 = vmatprep.subr.mxu0 0.0
    %756 = vmatpush1.msra.mxu0 0.0
    %757 = vmatprep.subr.mxu0 0.0
    %758 = vmatpush1.msra.mxu0 0.0
    %759 = vmatprep.subr.mxu0 0.0
    %760 = vmatpush1.msra.mxu0 0.0
    %761 = vmatprep.mubr.f32.mxu0 0.0
    %762 = vmatmul.mubr.f32.gmra.mrb[0].mxu0 %v55
    %v763 = vpop.f32.mrb[0].mxu0
    %v764 = vadd.f32 0.0, %v763
    %v765 = vpop.f32.mrb[0].mxu0
    %766 = vmatprep.mubr.f32.mxu0 0.0
    %767 = vmatmul.mubr.f32.gmra.mrb[0].mxu0 %v58
    %v768 = vpop.f32.mrb[0].mxu0
    %v769 = vadd.f32 0.0, %v768
    %v770 = vpop.f32.mrb[0].mxu0
    %771 = vdwg.mxu0
    %v772 = vmul.f32 %v604, %v604
    %v773 = vmul.f32 %v609, %v609
    %v774 = vsel %vm295, %v772, 0.0
    %775 = vadd.xlane.f32.xlu0 %v774
    %v776 = vpop.xlane.xlu0 %775
    %v777 = vsel %vm295, %v773, 0.0
    %778 = vadd.xlane.f32.xlu0 %v777
    %v779 = vpop.xlane.xlu0 %778
    %v780 = vadd.f32 %v776, 1e-12
    %v781 = vadd.f32 %v779, 1e-12
    %v782 = vrsqrt.pop %v780
    %v783 = vrsqrt.pop %v781
    %v784 = vmul.f32 %v604, %v782
    %v785 = vmul.f32 %v609, %v783
    %v786 = vmul.f32 %v684, %v684
    %v787 = vmul.f32 %v689, %v689
    %v788 = vsel %vm295, %v786, 0.0
    %789 = vadd.xlane.f32.xlu0 %v788
    %v790 = vpop.xlane.xlu0 %789
    %v791 = vsel %vm295, %v787, 0.0
    %792 = vadd.xlane.f32.xlu0 %v791
    %v793 = vpop.xlane.xlu0 %792
    %v794 = vadd.f32 %v790, 1e-12
    %v795 = vadd.f32 %v793, 1e-12
    %v796 = vrsqrt.pop %v794
    %v797 = vrsqrt.pop %v795
    %v798 = vmul.f32 %v684, %v796
    %v799 = vmul.f32 %v689, %v797
    %v800 = vld [vmem:[%s5 + $0x1] sm:$0x1]
    %v801 = vlaneseq
    %v802 = vshrl.u32 %v801, 7
    %v803 = vsub.s32 0, %v802
    %v804 = vrot.slane %v800, %v803
    %v805 = vmul.f32 %v784, %v804
    %v806 = vmul.f32 %v785, %v804
    %v807 = vld [vmem:[%s6 + $0x1] sm:$0x1]
    %v808 = vlaneseq
    %v809 = vshrl.u32 %v808, 7
    %v810 = vsub.s32 0, %v809
    %v811 = vrot.slane %v807, %v810
    %v812 = vmul.f32 %v798, %v811
    %v813 = vmul.f32 %v799, %v811
    %v815 = vsel %vm295, %v805, 0
    %v818 = vsel %vm295, %v806, 0
    %v821 = vsel %vm295, %v812, 0
    %v824 = vsel %vm295, %v813, 0
    %826 = vmatprep.subr.mxu0 0.0
    %827 = vmatpush1.xpose.msra.mxu0 %v821
    %828 = vmatprep.subr.mxu0 0.0
    %829 = vmatpush1.xpose.msra.mxu0 %v824
    %830 = vmatprep.subr.mxu0 0.0
    %831 = vmatpush1.xpose.msra.mxu0 0.0
    %832 = vmatprep.subr.mxu0 0.0
    %833 = vmatpush1.xpose.msra.mxu0 0.0
    %834 = vmatprep.subr.mxu0 0.0
    %835 = vmatpush1.xpose.msra.mxu0 0.0
    %836 = vmatprep.subr.mxu0 0.0
    %837 = vmatpush1.xpose.msra.mxu0 0.0
    %838 = vmatprep.subr.mxu0 0.0
    %839 = vmatpush1.xpose.msra.mxu0 0.0
    %840 = vmatprep.subr.mxu0 0.0
    %841 = vmatpush1.xpose.msra.mxu0 0.0
    %842 = vmatprep.subr.mxu0 0.0
    %843 = vmatpush1.xpose.msra.mxu0 0.0
    %844 = vmatprep.subr.mxu0 0.0
    %845 = vmatpush1.xpose.msra.mxu0 0.0
    %846 = vmatprep.subr.mxu0 0.0
    %847 = vmatpush1.xpose.msra.mxu0 0.0
    %848 = vmatprep.subr.mxu0 0.0
    %849 = vmatpush1.xpose.msra.mxu0 0.0
    %850 = vmatprep.subr.mxu0 0.0
    %851 = vmatpush1.xpose.msra.mxu0 0.0
    %852 = vmatprep.subr.mxu0 0.0
    %853 = vmatpush1.xpose.msra.mxu0 0.0
    %854 = vmatprep.subr.mxu0 0.0
    %855 = vmatpush1.xpose.msra.mxu0 0.0
    %856 = vmatprep.subr.mxu0 0.0
    %857 = vmatpush1.xpose.msra.mxu0 0.0
    %858 = vmatprep.subr.mxu0 0.0
    %859 = vmatpush1.xpose.msra.mxu0 0.0
    %860 = vmatprep.subr.mxu0 0.0
    %861 = vmatpush1.xpose.msra.mxu0 0.0
    %862 = vmatprep.subr.mxu0 0.0
    %863 = vmatpush1.xpose.msra.mxu0 0.0
    %864 = vmatprep.subr.mxu0 0.0
    %865 = vmatpush1.xpose.msra.mxu0 0.0
    %866 = vmatprep.subr.mxu0 0.0
    %867 = vmatpush1.xpose.msra.mxu0 0.0
    %868 = vmatprep.subr.mxu0 0.0
    %869 = vmatpush1.xpose.msra.mxu0 0.0
    %870 = vmatprep.subr.mxu0 0.0
    %871 = vmatpush1.xpose.msra.mxu0 0.0
    %872 = vmatprep.subr.mxu0 0.0
    %873 = vmatpush1.xpose.msra.mxu0 0.0
    %874 = vmatprep.subr.mxu0 0.0
    %875 = vmatpush1.xpose.msra.mxu0 0.0
    %876 = vmatprep.subr.mxu0 0.0
    %877 = vmatpush1.xpose.msra.mxu0 0.0
    %878 = vmatprep.subr.mxu0 0.0
    %879 = vmatpush1.xpose.msra.mxu0 0.0
    %880 = vmatprep.subr.mxu0 0.0
    %881 = vmatpush1.xpose.msra.mxu0 0.0
    %882 = vmatprep.subr.mxu0 0.0
    %883 = vmatpush1.xpose.msra.mxu0 0.0
    %884 = vmatprep.subr.mxu0 0.0
    %885 = vmatpush1.xpose.msra.mxu0 0.0
    %886 = vmatprep.subr.mxu0 0.0
    %887 = vmatpush1.xpose.msra.mxu0 0.0
    %888 = vmatprep.subr.mxu0 0.0
    %889 = vmatpush1.xpose.msra.mxu0 0.0
    %890 = vmatprep.mubr.f32.mxu0 0.0
    %891 = vmatmul.mubr.f32.gmra.mrb[0].mxu0 %v815
    %v892 = vpop.f32.mrb[0].mxu0
    %v893 = vadd.f32 0.0, %v892
    %v894 = vpop.f32.mrb[0].mxu0
    %895 = vmatprep.mubr.f32.mxu0 0.0
    %896 = vmatmul.mubr.f32.gmra.mrb[0].mxu0 %v818
    %v897 = vpop.f32.mrb[0].mxu0
    %v898 = vadd.f32 0.0, %v897
    %v899 = vpop.f32.mrb[0].mxu0
    %900 = vdwg.mxu0
    %v901 = vmul.f32 %v893, 10.0
    %v902 = vmul.f32 %v898, 10.0
    %v903 = vadd.f32 %v901, %v47
    %v904 = vadd.f32 %v902, %v48
    %v905 = vsel %vm295, %v903, -inf
    %906 = vmax.xlane.f32.xlu0 %v905
    %v907 = vpop.xlane.xlu0 %906
    %v908 = vsel %vm295, %v904, -inf
    %909 = vmax.xlane.f32.xlu0 %v908
    %v910 = vpop.xlane.xlu0 %909
    %v911 = vsub.f32 %v903, %v907
    %v912 = vsub.f32 %v904, %v910
    %v913 = vmul.f32 %v911, 1.442695
    %v914 = vpow.pop %v913
    %v915 = vmul.f32 %v912, 1.442695
    %v916 = vpow.pop %v915
    %v917 = vsel %vm295, %v914, 0.0
    %918 = vadd.xlane.f32.xlu0 %v917
    %v919 = vpop.xlane.xlu0 %918
    %v920 = vsel %vm295, %v916, 0.0
    %921 = vadd.xlane.f32.xlu0 %v920
    %v922 = vpop.xlane.xlu0 %921
    %v923 = vrcp.pop %v919
    %v924 = vrcp.pop %v922
    %v925 = vmul.f32 %v914, %v923
    %v926 = vmul.f32 %v916, %v924
    %v928 = vsel %vm295, %v925, 0
    %v931 = vsel %vm295, %v926, 0
    %933 = vmatprep.subr.mxu0 0.0
    %934 = vmatpush1.msra.mxu0 %v764
    %935 = vmatprep.subr.mxu0 0.0
    %936 = vmatpush1.msra.mxu0 %v769
    %937 = vmatprep.subr.mxu0 0.0
    %938 = vmatpush1.msra.mxu0 0.0
    %939 = vmatprep.subr.mxu0 0.0
    %940 = vmatpush1.msra.mxu0 0.0
    %941 = vmatprep.subr.mxu0 0.0
    %942 = vmatpush1.msra.mxu0 0.0
    %943 = vmatprep.subr.mxu0 0.0
    %944 = vmatpush1.msra.mxu0 0.0
    %945 = vmatprep.subr.mxu0 0.0
    %946 = vmatpush1.msra.mxu0 0.0
    %947 = vmatprep.subr.mxu0 0.0
    %948 = vmatpush1.msra.mxu0 0.0
    %949 = vmatprep.subr.mxu0 0.0
    %950 = vmatpush1.msra.mxu0 0.0
    %951 = vmatprep.subr.mxu0 0.0
    %952 = vmatpush1.msra.mxu0 0.0
    %953 = vmatprep.subr.mxu0 0.0
    %954 = vmatpush1.msra.mxu0 0.0
    %955 = vmatprep.subr.mxu0 0.0
    %956 = vmatpush1.msra.mxu0 0.0
    %957 = vmatprep.subr.mxu0 0.0
    %958 = vmatpush1.msra.mxu0 0.0
    %959 = vmatprep.subr.mxu0 0.0
    %960 = vmatpush1.msra.mxu0 0.0
    %961 = vmatprep.subr.mxu0 0.0
    %962 = vmatpush1.msra.mxu0 0.0
    %963 = vmatprep.subr.mxu0 0.0
    %964 = vmatpush1.msra.mxu0 0.0
    %965 = vmatprep.subr.mxu0 0.0
    %966 = vmatpush1.msra.mxu0 0.0
    %967 = vmatprep.subr.mxu0 0.0
    %968 = vmatpush1.msra.mxu0 0.0
    %969 = vmatprep.subr.mxu0 0.0
    %970 = vmatpush1.msra.mxu0 0.0
    %971 = vmatprep.subr.mxu0 0.0
    %972 = vmatpush1.msra.mxu0 0.0
    %973 = vmatprep.subr.mxu0 0.0
    %974 = vmatpush1.msra.mxu0 0.0
    %975 = vmatprep.subr.mxu0 0.0
    %976 = vmatpush1.msra.mxu0 0.0
    %977 = vmatprep.subr.mxu0 0.0
    %978 = vmatpush1.msra.mxu0 0.0
    %979 = vmatprep.subr.mxu0 0.0
    %980 = vmatpush1.msra.mxu0 0.0
    %981 = vmatprep.subr.mxu0 0.0
    %982 = vmatpush1.msra.mxu0 0.0
    %983 = vmatprep.subr.mxu0 0.0
    %984 = vmatpush1.msra.mxu0 0.0
    %985 = vmatprep.subr.mxu0 0.0
    %986 = vmatpush1.msra.mxu0 0.0
    %987 = vmatprep.subr.mxu0 0.0
    %988 = vmatpush1.msra.mxu0 0.0
    %989 = vmatprep.subr.mxu0 0.0
    %990 = vmatpush1.msra.mxu0 0.0
    %991 = vmatprep.subr.mxu0 0.0
    %992 = vmatpush1.msra.mxu0 0.0
    %993 = vmatprep.subr.mxu0 0.0
    %994 = vmatpush1.msra.mxu0 0.0
    %995 = vmatprep.subr.mxu0 0.0
    %996 = vmatpush1.msra.mxu0 0.0
    %997 = vmatprep.mubr.f32.mxu0 0.0
    %998 = vmatmul.mubr.f32.gmra.mrb[0].mxu0 %v928
    %v999 = vpop.f32.mrb[0].mxu0
    %v1000 = vadd.f32 0.0, %v999
    %v1001 = vpop.f32.mrb[0].mxu0
    %1002 = vmatprep.mubr.f32.mxu0 0.0
    %1003 = vmatmul.mubr.f32.gmra.mrb[0].mxu0 %v931
    %v1004 = vpop.f32.mrb[0].mxu0
    %v1005 = vadd.f32 0.0, %v1004
    %v1006 = vpop.f32.mrb[0].mxu0
    %1007 = vdwg.mxu0
    %s1008 = scalar_lea.vmem %s4, 16
    %v1009 = vld [vmem:[%s1008] sm:$0xff]
    %v1010 = vld [vmem:[%s1008 + $0x8] sm:$0xff]
    %v1012 = vsel %vm295, %v1000, 0
    %v1015 = vsel %vm295, %v1005, 0
    %1017 = vmatprep.subr.mxu0 0.0
    %1018 = vmatpush1.msra.mxu0 %v1009
    %1019 = vmatprep.subr.mxu0 0.0
    %1020 = vmatpush1.msra.mxu0 %v1010
    %1021 = vmatprep.subr.mxu0 0.0
    %1022 = vmatpush1.msra.mxu0 0.0
    %1023 = vmatprep.subr.mxu0 0.0
    %1024 = vmatpush1.msra.mxu0 0.0
    %1025 = vmatprep.subr.mxu0 0.0
    %1026 = vmatpush1.msra.mxu0 0.0
    %1027 = vmatprep.subr.mxu0 0.0
    %1028 = vmatpush1.msra.mxu0 0.0
    %1029 = vmatprep.subr.mxu0 0.0
    %1030 = vmatpush1.msra.mxu0 0.0
    %1031 = vmatprep.subr.mxu0 0.0
    %1032 = vmatpush1.msra.mxu0 0.0
    %1033 = vmatprep.subr.mxu0 0.0
    %1034 = vmatpush1.msra.mxu0 0.0
    %1035 = vmatprep.subr.mxu0 0.0
    %1036 = vmatpush1.msra.mxu0 0.0
    %1037 = vmatprep.subr.mxu0 0.0
    %1038 = vmatpush1.msra.mxu0 0.0
    %1039 = vmatprep.subr.mxu0 0.0
    %1040 = vmatpush1.msra.mxu0 0.0
    %1041 = vmatprep.subr.mxu0 0.0
    %1042 = vmatpush1.msra.mxu0 0.0
    %1043 = vmatprep.subr.mxu0 0.0
    %1044 = vmatpush1.msra.mxu0 0.0
    %1045 = vmatprep.subr.mxu0 0.0
    %1046 = vmatpush1.msra.mxu0 0.0
    %1047 = vmatprep.subr.mxu0 0.0
    %1048 = vmatpush1.msra.mxu0 0.0
    %1049 = vmatprep.subr.mxu0 0.0
    %1050 = vmatpush1.msra.mxu0 0.0
    %1051 = vmatprep.subr.mxu0 0.0
    %1052 = vmatpush1.msra.mxu0 0.0
    %1053 = vmatprep.subr.mxu0 0.0
    %1054 = vmatpush1.msra.mxu0 0.0
    %1055 = vmatprep.subr.mxu0 0.0
    %1056 = vmatpush1.msra.mxu0 0.0
    %1057 = vmatprep.subr.mxu0 0.0
    %1058 = vmatpush1.msra.mxu0 0.0
    %1059 = vmatprep.subr.mxu0 0.0
    %1060 = vmatpush1.msra.mxu0 0.0
    %1061 = vmatprep.subr.mxu0 0.0
    %1062 = vmatpush1.msra.mxu0 0.0
    %1063 = vmatprep.subr.mxu0 0.0
    %1064 = vmatpush1.msra.mxu0 0.0
    %1065 = vmatprep.subr.mxu0 0.0
    %1066 = vmatpush1.msra.mxu0 0.0
    %1067 = vmatprep.subr.mxu0 0.0
    %1068 = vmatpush1.msra.mxu0 0.0
    %1069 = vmatprep.subr.mxu0 0.0
    %1070 = vmatpush1.msra.mxu0 0.0
    %1071 = vmatprep.subr.mxu0 0.0
    %1072 = vmatpush1.msra.mxu0 0.0
    %1073 = vmatprep.subr.mxu0 0.0
    %1074 = vmatpush1.msra.mxu0 0.0
    %1075 = vmatprep.subr.mxu0 0.0
    %1076 = vmatpush1.msra.mxu0 0.0
    %1077 = vmatprep.subr.mxu0 0.0
    %1078 = vmatpush1.msra.mxu0 0.0
    %1079 = vmatprep.subr.mxu0 0.0
    %1080 = vmatpush1.msra.mxu0 0.0
    %1081 = vmatprep.mubr.f32.mxu0 0.0
    %1082 = vmatmul.mubr.f32.gmra.mrb[0].mxu0 %v1012
    %v1083 = vpop.f32.mrb[0].mxu0
    %v1084 = vadd.f32 0.0, %v1083
    %v1085 = vpop.f32.mrb[0].mxu0
    %1086 = vmatprep.mubr.f32.mxu0 0.0
    %1087 = vmatmul.mubr.f32.gmra.mrb[0].mxu0 %v1015
    %v1088 = vpop.f32.mrb[0].mxu0
    %v1089 = vadd.f32 0.0, %v1088
    %v1090 = vpop.f32.mrb[0].mxu0
    %1091 = vdwg.mxu0
    %v1093 = vsel %vm295, %v522, 0
    %v1096 = vsel %vm295, %v527, 0
    %1098 = vmatprep.subr.mxu0 0.0
    %1099 = vmatpush1.msra.mxu0 %v530
    %1100 = vmatprep.subr.mxu0 0.0
    %1101 = vmatpush1.msra.mxu0 %v531
    %1102 = vmatprep.subr.mxu0 0.0
    %1103 = vmatpush1.msra.mxu0 0.0
    %1104 = vmatprep.subr.mxu0 0.0
    %1105 = vmatpush1.msra.mxu0 0.0
    %1106 = vmatprep.subr.mxu0 0.0
    %1107 = vmatpush1.msra.mxu0 0.0
    %1108 = vmatprep.subr.mxu0 0.0
    %1109 = vmatpush1.msra.mxu0 0.0
    %1110 = vmatprep.subr.mxu0 0.0
    %1111 = vmatpush1.msra.mxu0 0.0
    %1112 = vmatprep.subr.mxu0 0.0
    %1113 = vmatpush1.msra.mxu0 0.0
    %1114 = vmatprep.subr.mxu0 0.0
    %1115 = vmatpush1.msra.mxu0 0.0
    %1116 = vmatprep.subr.mxu0 0.0
    %1117 = vmatpush1.msra.mxu0 0.0
    %1118 = vmatprep.subr.mxu0 0.0
    %1119 = vmatpush1.msra.mxu0 0.0
    %1120 = vmatprep.subr.mxu0 0.0
    %1121 = vmatpush1.msra.mxu0 0.0
    %1122 = vmatprep.subr.mxu0 0.0
    %1123 = vmatpush1.msra.mxu0 0.0
    %1124 = vmatprep.subr.mxu0 0.0
    %1125 = vmatpush1.msra.mxu0 0.0
    %1126 = vmatprep.subr.mxu0 0.0
    %1127 = vmatpush1.msra.mxu0 0.0
    %1128 = vmatprep.subr.mxu0 0.0
    %1129 = vmatpush1.msra.mxu0 0.0
    %1130 = vmatprep.subr.mxu0 0.0
    %1131 = vmatpush1.msra.mxu0 0.0
    %1132 = vmatprep.subr.mxu0 0.0
    %1133 = vmatpush1.msra.mxu0 0.0
    %1134 = vmatprep.subr.mxu0 0.0
    %1135 = vmatpush1.msra.mxu0 0.0
    %1136 = vmatprep.subr.mxu0 0.0
    %1137 = vmatpush1.msra.mxu0 0.0
    %1138 = vmatprep.subr.mxu0 0.0
    %1139 = vmatpush1.msra.mxu0 0.0
    %1140 = vmatprep.subr.mxu0 0.0
    %1141 = vmatpush1.msra.mxu0 0.0
    %1142 = vmatprep.subr.mxu0 0.0
    %1143 = vmatpush1.msra.mxu0 0.0
    %1144 = vmatprep.subr.mxu0 0.0
    %1145 = vmatpush1.msra.mxu0 0.0
    %1146 = vmatprep.subr.mxu0 0.0
    %1147 = vmatpush1.msra.mxu0 0.0
    %1148 = vmatprep.subr.mxu0 0.0
    %1149 = vmatpush1.msra.mxu0 0.0
    %1150 = vmatprep.subr.mxu0 0.0
    %1151 = vmatpush1.msra.mxu0 0.0
    %1152 = vmatprep.subr.mxu0 0.0
    %1153 = vmatpush1.msra.mxu0 0.0
    %1154 = vmatprep.subr.mxu0 0.0
    %1155 = vmatpush1.msra.mxu0 0.0
    %1156 = vmatprep.subr.mxu0 0.0
    %1157 = vmatpush1.msra.mxu0 0.0
    %1158 = vmatprep.subr.mxu0 0.0
    %1159 = vmatpush1.msra.mxu0 0.0
    %1160 = vmatprep.subr.mxu0 0.0
    %1161 = vmatpush1.msra.mxu0 0.0
    %1162 = vmatprep.mubr.f32.mxu0 0.0
    %1163 = vmatmul.mubr.f32.gmra.mrb[0].mxu0 %v1093
    %v1164 = vpop.f32.mrb[0].mxu0
    %v1165 = vadd.f32 %v1084, %v1164
    %v1166 = vpop.f32.mrb[0].mxu0
    %1167 = vmatprep.mubr.f32.mxu0 0.0
    %1168 = vmatmul.mubr.f32.gmra.mrb[0].mxu0 %v1096
    %v1169 = vpop.f32.mrb[0].mxu0
    %v1170 = vadd.f32 %v1089, %v1169
    %v1171 = vpop.f32.mrb[0].mxu0
    %1172 = vdwg.mxu0
    %v1173 = vld [vmem:[%s7] sm:$0xff]
    %v1174 = vld [vmem:[%s7 + $0x8] sm:$0xff]
    %v1175 = vld [vmem:[%s7 + $0x10] sm:$0xff]
    %v1176 = vld [vmem:[%s7 + $0x18] sm:$0xff]
    %v1177 = vld [vmem:[%s8] sm:$0x1]
    %v1179 = vlaneseq
    %v1180 = vshrl.u32 %v1179, 7
    %v1181 = vsub.s32 0, %v1180
    %v1182 = vrot.slane %v1177, %v1181
    %v1185 = vsel %vm53, %v1165, 0
    %v1188 = vsel %vm53, %v1170, 0
    %1190 = vmatprep.subr.mxu0 0.0
    %1191 = vmatpush1.msra.mxu0 %v1173
    %1192 = vmatprep.subr.mxu0 0.0
    %1193 = vmatpush1.msra.mxu0 %v1174
    %1194 = vmatprep.subr.mxu0 0.0
    %1195 = vmatpush1.msra.mxu0 %v1175
    %1196 = vmatprep.subr.mxu0 0.0
    %1197 = vmatpush1.msra.mxu0 %v1176
    %1198 = vmatprep.subr.mxu0 0.0
    %1199 = vmatpush1.msra.mxu0 0.0
    %1200 = vmatprep.subr.mxu0 0.0
    %1201 = vmatpush1.msra.mxu0 0.0
    %1202 = vmatprep.subr.mxu0 0.0
    %1203 = vmatpush1.msra.mxu0 0.0
    %1204 = vmatprep.subr.mxu0 0.0
    %1205 = vmatpush1.msra.mxu0 0.0
    %1206 = vmatprep.subr.mxu0 0.0
    %1207 = vmatpush1.msra.mxu0 0.0
    %1208 = vmatprep.subr.mxu0 0.0
    %1209 = vmatpush1.msra.mxu0 0.0
    %1210 = vmatprep.subr.mxu0 0.0
    %1211 = vmatpush1.msra.mxu0 0.0
    %1212 = vmatprep.subr.mxu0 0.0
    %1213 = vmatpush1.msra.mxu0 0.0
    %1214 = vmatprep.subr.mxu0 0.0
    %1215 = vmatpush1.msra.mxu0 0.0
    %1216 = vmatprep.subr.mxu0 0.0
    %1217 = vmatpush1.msra.mxu0 0.0
    %1218 = vmatprep.subr.mxu0 0.0
    %1219 = vmatpush1.msra.mxu0 0.0
    %1220 = vmatprep.subr.mxu0 0.0
    %1221 = vmatpush1.msra.mxu0 0.0
    %1222 = vmatprep.subr.mxu0 0.0
    %1223 = vmatpush1.msra.mxu0 0.0
    %1224 = vmatprep.subr.mxu0 0.0
    %1225 = vmatpush1.msra.mxu0 0.0
    %1226 = vmatprep.subr.mxu0 0.0
    %1227 = vmatpush1.msra.mxu0 0.0
    %1228 = vmatprep.subr.mxu0 0.0
    %1229 = vmatpush1.msra.mxu0 0.0
    %1230 = vmatprep.subr.mxu0 0.0
    %1231 = vmatpush1.msra.mxu0 0.0
    %1232 = vmatprep.subr.mxu0 0.0
    %1233 = vmatpush1.msra.mxu0 0.0
    %1234 = vmatprep.subr.mxu0 0.0
    %1235 = vmatpush1.msra.mxu0 0.0
    %1236 = vmatprep.subr.mxu0 0.0
    %1237 = vmatpush1.msra.mxu0 0.0
    %1238 = vmatprep.subr.mxu0 0.0
    %1239 = vmatpush1.msra.mxu0 0.0
    %1240 = vmatprep.subr.mxu0 0.0
    %1241 = vmatpush1.msra.mxu0 0.0
    %1242 = vmatprep.subr.mxu0 0.0
    %1243 = vmatpush1.msra.mxu0 0.0
    %1244 = vmatprep.subr.mxu0 0.0
    %1245 = vmatpush1.msra.mxu0 0.0
    %1246 = vmatprep.subr.mxu0 0.0
    %1247 = vmatpush1.msra.mxu0 0.0
    %1248 = vmatprep.subr.mxu0 0.0
    %1249 = vmatpush1.msra.mxu0 0.0
    %1250 = vmatprep.subr.mxu0 0.0
    %1251 = vmatpush1.msra.mxu0 0.0
    %1252 = vmatprep.subr.mxu0 0.0
    %1253 = vmatpush1.msra.mxu0 0.0
    %1254 = vmatprep.mubr.f32.mxu0 0.0
    %1255 = vmatmul.mubr.f32.gmra.mrb[0].mxu0 %v1185
    %v1256 = vpop.f32.mrb[0].mxu0
    %v1257 = vadd.f32 %v1182, %v1256
    %v1258 = vpop.f32.mrb[0].mxu0
    %1259 = vmatprep.mubr.f32.mxu0 0.0
    %1260 = vmatmul.mubr.f32.gmra.mrb[0].mxu0 %v1188
    %v1261 = vpop.f32.mrb[0].mxu0
    %v1262 = vadd.f32 %v1182, %v1261
    %v1263 = vpop.f32.mrb[0].mxu0
    %1264 = vdwg.mxu0
    %v1265 = vmul.f32 %v1257, %v1257
    %v1266 = vmul.f32 %v1262, %v1262
    %v1267 = vmul.f32 %v1257, %v1265
    %v1268 = vmul.f32 %v1262, %v1266
    %v1269 = vmul.f32 %v1267, 0.044715
    %v1270 = vmul.f32 %v1268, 0.044715
    %v1271 = vadd.f32 %v1257, %v1269
    %v1272 = vadd.f32 %v1262, %v1270
    %v1273 = vmul.f32 %v1271, 0.7978846
    %v1274 = vmul.f32 %v1272, 0.7978846
    %v1275 = vtanh.pop %v1273
    %v1276 = vtanh.pop %v1274
    %v1277 = vadd.f32 %v1275, 1.0
    %v1278 = vadd.f32 %v1276, 1.0
    %v1279 = vmul.f32 %v1277, 0.5
    %v1280 = vmul.f32 %v1278, 0.5
    %v1281 = vmul.f32 %v1257, %v1279
    %v1282 = vmul.f32 %v1262, %v1280
    %v1283 = vld [vmem:[%s11] sm:$0xff]
    %v1284 = vld [vmem:[%s11 + $0x8] sm:$0xff]
    %v1285 = vld [vmem:[%s11 + $0x10] sm:$0xff]
    %v1286 = vld [vmem:[%s11 + $0x18] sm:$0xff]
    %v1287 = vld [vmem:[%s9] sm:$0xff]
    %v1288 = vld [vmem:[%s9 + $0x8] sm:$0xff]
    %v1289 = vld [vmem:[%s9 + $0x10] sm:$0xff]
    %v1290 = vld [vmem:[%s9 + $0x18] sm:$0xff]
    %v1291 = vld [vmem:[%s9 + $0x20] sm:$0xff]
    %v1292 = vld [vmem:[%s9 + $0x28] sm:$0xff]
    %v1293 = vld [vmem:[%s9 + $0x30] sm:$0xff]
    %v1294 = vld [vmem:[%s9 + $0x38] sm:$0xff]
    %v1295 = vld [vmem:[%s9 + $0x40] sm:$0xff]
    %v1296 = vld [vmem:[%s9 + $0x48] sm:$0xff]
    %v1297 = vld [vmem:[%s9 + $0x50] sm:$0xff]
    %v1298 = vld [vmem:[%s9 + $0x58] sm:$0xff]
    %v1299 = vld [vmem:[%s9 + $0x60] sm:$0xff]
    %v1300 = vld [vmem:[%s9 + $0x68] sm:$0xff]
    %v1301 = vld [vmem:[%s9 + $0x70] sm:$0xff]
    %v1302 = vld [vmem:[%s9 + $0x78] sm:$0xff]
    %1303 = vmatprep.subr.mxu0 0.0
    %1304 = vmatpush1.msra.mxu0 %v1287
    %1305 = vmatprep.subr.mxu0 0.0
    %1306 = vmatpush1.msra.mxu0 %v1288
    %1307 = vmatprep.subr.mxu0 0.0
    %1308 = vmatpush1.msra.mxu0 %v1289
    %1309 = vmatprep.subr.mxu0 0.0
    %1310 = vmatpush1.msra.mxu0 %v1290
    %1311 = vmatprep.subr.mxu0 0.0
    %1312 = vmatpush1.msra.mxu0 %v1291
    %1313 = vmatprep.subr.mxu0 0.0
    %1314 = vmatpush1.msra.mxu0 %v1292
    %1315 = vmatprep.subr.mxu0 0.0
    %1316 = vmatpush1.msra.mxu0 %v1293
    %1317 = vmatprep.subr.mxu0 0.0
    %1318 = vmatpush1.msra.mxu0 %v1294
    %1319 = vmatprep.subr.mxu0 0.0
    %1320 = vmatpush1.msra.mxu0 %v1295
    %1321 = vmatprep.subr.mxu0 0.0
    %1322 = vmatpush1.msra.mxu0 %v1296
    %1323 = vmatprep.subr.mxu0 0.0
    %1324 = vmatpush1.msra.mxu0 %v1297
    %1325 = vmatprep.subr.mxu0 0.0
    %1326 = vmatpush1.msra.mxu0 %v1298
    %1327 = vmatprep.subr.mxu0 0.0
    %1328 = vmatpush1.msra.mxu0 %v1299
    %1329 = vmatprep.subr.mxu0 0.0
    %1330 = vmatpush1.msra.mxu0 %v1300
    %1331 = vmatprep.subr.mxu0 0.0
    %1332 = vmatpush1.msra.mxu0 %v1301
    %1333 = vmatprep.subr.mxu0 0.0
    %1334 = vmatpush1.msra.mxu0 %v1302
    %1335 = vmatprep.subr.mxu0 0.0
    %1336 = vmatpush1.msra.mxu0 0.0
    %1337 = vmatprep.subr.mxu0 0.0
    %1338 = vmatpush1.msra.mxu0 0.0
    %1339 = vmatprep.subr.mxu0 0.0
    %1340 = vmatpush1.msra.mxu0 0.0
    %1341 = vmatprep.subr.mxu0 0.0
    %1342 = vmatpush1.msra.mxu0 0.0
    %1343 = vmatprep.subr.mxu0 0.0
    %1344 = vmatpush1.msra.mxu0 0.0
    %1345 = vmatprep.subr.mxu0 0.0
    %1346 = vmatpush1.msra.mxu0 0.0
    %1347 = vmatprep.subr.mxu0 0.0
    %1348 = vmatpush1.msra.mxu0 0.0
    %1349 = vmatprep.subr.mxu0 0.0
    %1350 = vmatpush1.msra.mxu0 0.0
    %1351 = vmatprep.subr.mxu0 0.0
    %1352 = vmatpush1.msra.mxu0 0.0
    %1353 = vmatprep.subr.mxu0 0.0
    %1354 = vmatpush1.msra.mxu0 0.0
    %1355 = vmatprep.subr.mxu0 0.0
    %1356 = vmatpush1.msra.mxu0 0.0
    %1357 = vmatprep.subr.mxu0 0.0
    %1358 = vmatpush1.msra.mxu0 0.0
    %1359 = vmatprep.subr.mxu0 0.0
    %1360 = vmatpush1.msra.mxu0 0.0
    %1361 = vmatprep.subr.mxu0 0.0
    %1362 = vmatpush1.msra.mxu0 0.0
    %1363 = vmatprep.subr.mxu0 0.0
    %1364 = vmatpush1.msra.mxu0 0.0
    %1365 = vmatprep.subr.mxu0 0.0
    %1366 = vmatpush1.msra.mxu0 0.0
    %1367 = vmatprep.mubr.f32.mxu0 0.0
    %1368 = vmatmul.mubr.f32.gmra.mrb[0].mxu0 %v1281
    %v1369 = vpop.f32.mrb[0].mxu0
    %v1370 = vadd.f32 0.0, %v1369
    %v1371 = vpop.f32.mrb[0].mxu0
    %1372 = vmatprep.mubr.f32.mxu0 0.0
    %1373 = vmatmul.mubr.f32.gmra.mrb[0].mxu0 %v1282
    %v1374 = vpop.f32.mrb[0].mxu0
    %v1375 = vadd.f32 0.0, %v1374
    %v1376 = vpop.f32.mrb[0].mxu0
    %1377 = vdwg.mxu0
    %1378 = vmatprep.subr.mxu0 0.0
    %1379 = vmatpush1.msra.mxu0 %v1283
    %1380 = vmatprep.subr.mxu0 0.0
    %1381 = vmatpush1.msra.mxu0 %v1284
    %1382 = vmatprep.subr.mxu0 0.0
    %1383 = vmatpush1.msra.mxu0 %v1285
    %1384 = vmatprep.subr.mxu0 0.0
    %1385 = vmatpush1.msra.mxu0 %v1286
    %1386 = vmatprep.subr.mxu0 0.0
    %1387 = vmatpush1.msra.mxu0 0.0
    %1388 = vmatprep.subr.mxu0 0.0
    %1389 = vmatpush1.msra.mxu0 0.0
    %1390 = vmatprep.subr.mxu0 0.0
    %1391 = vmatpush1.msra.mxu0 0.0
    %1392 = vmatprep.subr.mxu0 0.0
    %1393 = vmatpush1.msra.mxu0 0.0
    %1394 = vmatprep.subr.mxu0 0.0
    %1395 = vmatpush1.msra.mxu0 0.0
    %1396 = vmatprep.subr.mxu0 0.0
    %1397 = vmatpush1.msra.mxu0 0.0
    %1398 = vmatprep.subr.mxu0 0.0
    %1399 = vmatpush1.msra.mxu0 0.0
    %1400 = vmatprep.subr.mxu0 0.0
    %1401 = vmatpush1.msra.mxu0 0.0
    %1402 = vmatprep.subr.mxu0 0.0
    %1403 = vmatpush1.msra.mxu0 0.0
    %1404 = vmatprep.subr.mxu0 0.0
    %1405 = vmatpush1.msra.mxu0 0.0
    %1406 = vmatprep.subr.mxu0 0.0
    %1407 = vmatpush1.msra.mxu0 0.0
    %1408 = vmatprep.subr.mxu0 0.0
    %1409 = vmatpush1.msra.mxu0 0.0
    %1410 = vmatprep.subr.mxu0 0.0
    %1411 = vmatpush1.msra.mxu0 0.0
    %1412 = vmatprep.subr.mxu0 0.0
    %1413 = vmatpush1.msra.mxu0 0.0
    %1414 = vmatprep.subr.mxu0 0.0
    %1415 = vmatpush1.msra.mxu0 0.0
    %1416 = vmatprep.subr.mxu0 0.0
    %1417 = vmatpush1.msra.mxu0 0.0
    %1418 = vmatprep.subr.mxu0 0.0
    %1419 = vmatpush1.msra.mxu0 0.0
    %1420 = vmatprep.subr.mxu0 0.0
    %1421 = vmatpush1.msra.mxu0 0.0
    %1422 = vmatprep.subr.mxu0 0.0
    %1423 = vmatpush1.msra.mxu0 0.0
    %1424 = vmatprep.subr.mxu0 0.0
    %1425 = vmatpush1.msra.mxu0 0.0
    %1426 = vmatprep.subr.mxu0 0.0
    %1427 = vmatpush1.msra.mxu0 0.0
    %1428 = vmatprep.subr.mxu0 0.0
    %1429 = vmatpush1.msra.mxu0 0.0
    %1430 = vmatprep.subr.mxu0 0.0
    %1431 = vmatpush1.msra.mxu0 0.0
    %1432 = vmatprep.subr.mxu0 0.0
    %1433 = vmatpush1.msra.mxu0 0.0
    %1434 = vmatprep.subr.mxu0 0.0
    %1435 = vmatpush1.msra.mxu0 0.0
    %1436 = vmatprep.subr.mxu0 0.0
    %1437 = vmatpush1.msra.mxu0 0.0
    %1438 = vmatprep.subr.mxu0 0.0
    %1439 = vmatpush1.msra.mxu0 0.0
    %1440 = vmatprep.subr.mxu0 0.0
    %1441 = vmatpush1.msra.mxu0 0.0
    %1442 = vmatprep.mubr.f32.mxu0 0.0
    %1443 = vmatmul.mubr.f32.gmra.mrb[0].mxu0 %v1185
    %v1444 = vpop.f32.mrb[0].mxu0
    %v1445 = vadd.f32 %v1370, %v1444
    %v1446 = vpop.f32.mrb[0].mxu0
    %1447 = vmatprep.mubr.f32.mxu0 0.0
    %1448 = vmatmul.mubr.f32.gmra.mrb[0].mxu0 %v1188
    %v1449 = vpop.f32.mrb[0].mxu0
    %v1450 = vadd.f32 %v1375, %v1449
    %v1451 = vpop.f32.mrb[0].mxu0
    %1452 = vdwg.mxu0
    %v1453 = vld [vmem:[%s10] sm:$0x1]
    %v1455 = vlaneseq
    %v1456 = vshrl.u32 %v1455, 7
    %v1457 = vsub.s32 0, %v1456
    %v1458 = vrot.slane %v1453, %v1457
    %v1460 = vadd.f32 %v1445, %v1458
    %v1461 = vadd.f32 %v1450, %v1458
    %1462 = vst.msk [vmem:[#allocation2] sm:$0xff] %vm295, %v1460
    %1463 = vst.msk [vmem:[#allocation2 + $0x8] sm:$0xff] %vm295, %v1461
    // Predicated region
    $region54: #{echo_block.1} parent=1 // pred_check
      _
    $region55: #{echo_block.1} parent=1 // pred_check_branch
      %1465 = sbr.rel (0) target = $region57
    $region56: #{echo_block.1} parent=1 // pred_region
      %s1467 = ssub.s32 256, 256
      %1468 = vsyncadd [#allocation3], %s1467
      %s1469 = sshll.u32 [#allocation2], 4
      %s1470 = int_to_ptr.vmem [resolvable:$true] %s1469
      %1475 = dma.vmem_to_hbm [thread:$0]  %s1470, 256, %s13, [#allocation3], 128, 128, 8
    $region57: #{echo_block.1} parent=1 // pred_fallthru
      _
    // Predicated region
    $region58: #{echo_block.1} parent=1 // pred_check
      _
    $region59: #{echo_block.1} parent=1 // pred_check_branch
      %1477 = sbr.rel (0) target = $region61
    $region60: #{echo_block.1} parent=1 // pred_region
      %1478 = dma.done [#allocation3], 256
    $region61: #{echo_block.1} parent=1 // pred_fallthru
      _
    %1479 = vsyncpa [#allocation3], 1

</llo_original>
